<compile_context>
chip_gen: v6e
topology: v6e:2x2x1
jax: 0.10.0
libtpu: 0.0.40
codegen_flags: <defaults>
</compile_context>

<pallas_src>
import functools

import jax
import jax.numpy as jnp
import numpy as np
from jax import lax
from jax.experimental import pallas as pl
from jax.experimental.pallas import tpu as pltpu


def _sepconv_kernel(x_ref, wdw_ref, gamma_ref, beta_ref, wpw_ref, grp_ref, o_ref,
                    *, H, W, KH, KW, dilation, groups, eps, pointwise_bf16):
    # x_ref    : (B, C, Lin)   flat, zero-extended input  (Lin = H*W + (K-1)*d*(W+1))
    # wdw_ref  : (C, KH*KW)    depthwise weights, tap = kh*KW + kw
    # gamma_ref, beta_ref : (C, 1)   GroupNorm affine params
    # wpw_ref  : (Cout, C)     pointwise (1x1) weights
    # grp_ref  : (C, C)        same-group indicator (only used when gs > 1)
    # o_ref    : (B, Cout, L)  L = H*W   (lane-dense store)
    B, C, _ = x_ref.shape
    Cout = wpw_ref.shape[0]
    L = H * W
    gs = C // groups
    pb = ((KH - 1) * dilation) // 2

    # --- column-validity masks for the horizontal taps (dw = kw*dilation - pb) ----------
    # Row (kh) boundary handling is free: out-of-image rows read the zero extension.
    w_pos = lax.broadcasted_iota(jnp.int32, (1, 1, L), 2) % W
    col_masks = {}
    for kw in range(KW):
        dw = kw * dilation - pb
        if dw != 0 and dw not in col_masks:
            col_masks[dw] = jnp.logical_and(w_pos + dw >= 0, w_pos + dw < W)

    # --- depthwise KxK conv (stride=1): lane-shifted multiply-accumulate on the VPU -----
    # Kept in f32 (accuracy + v5e has no bf16 VALU).  Lane width = H*W (lane-dense).
    wdw = wdw_ref[...].astype(jnp.float32)                      # (C, KH*KW)
    acc = jnp.zeros((B, C, L), jnp.float32)
    for kh in range(KH):
        for kw in range(KW):
            off = kh * dilation * W + kw * dilation             # pure lane offset
            xs = x_ref[:, :, off:off + L].astype(jnp.float32)   # (B, C, L)
            dw = kw * dilation - pb
            if dw != 0:
                xs = jnp.where(col_masks[dw], xs, 0.0)
            wtap = wdw[:, kh * KW + kw:kh * KW + kw + 1].reshape(1, C, 1)
            acc = acc + xs * wtap

    # --- GroupNorm: two-pass (mean, then centered sum of squares) for numerical safety --
    inv_hw = 1.0 / float(L)
    s1 = jnp.sum(acc, axis=-1, keepdims=True)                   # (B, C, 1)
    if gs == 1:                                                 # groups == C (test config)
        mean_c = s1 * inv_hw
    else:
        grp = grp_ref[...].astype(jnp.float32)                  # hoisted, VMEM-resident
        pooled = jnp.stack([jnp.dot(grp, s1[b], preferred_element_type=jnp.float32)
                            for b in range(B)])
        mean_c = pooled * (inv_hw / gs)
    centered = acc - mean_c
    s2 = jnp.sum(centered * centered, axis=-1, keepdims=True)   # (B, C, 1)
    if gs == 1:
        var_c = s2 * inv_hw
    else:
        grp = grp_ref[...].astype(jnp.float32)
        pooled2 = jnp.stack([jnp.dot(grp, s2[b], preferred_element_type=jnp.float32)
                             for b in range(B)])
        var_c = pooled2 * (inv_hw / gs)
    inv_std = lax.rsqrt(var_c + eps)
    gamma = gamma_ref[...].astype(jnp.float32).reshape(1, C, 1)
    beta = beta_ref[...].astype(jnp.float32).reshape(1, C, 1)
    xn = centered * (inv_std * gamma) + beta                    # (B, C, L)

    # --- pointwise 1x1 conv: one MXU matmul per image, lane-dense (Cout, H*W) store -----
    if pointwise_bf16:                                          # v6e/v7x: bf16 operands, f32 acc
        wp = wpw_ref[...].astype(jnp.bfloat16)
        xn_mm = xn.astype(jnp.bfloat16)
    else:
        wp = wpw_ref[...].astype(jnp.float32)
        xn_mm = xn
    for b in range(B):
        o_ref[b] = jnp.dot(wp, xn_mm[b],
                           preferred_element_type=jnp.float32).astype(o_ref.dtype)


def separable_conv2d(x_nchw, w_dw, gamma, beta, w_pw, *,
                     kernel_size=3, stride=1, dilation=1, groups=32, eps=1e-5,
                     batch_block=8, pointwise_bf16=False):
    """Forward pass of SeparableConv2d. x_nchw: (N, Cin, H, W) -> (N, Cout, H, W)."""
    assert stride == 1  # TODO(synk): strided depthwise path not implemented (module default stride=1)
    N, Cin, H, W = x_nchw.shape
    Cout = w_pw.shape[0]
    KH = KW = kernel_size
    assert Cin % groups == 0

    pad_total = (kernel_size - 1) * dilation        # same semantics as fixed_padding
    pb = pad_total // 2
    pe = pad_total - pb
    L = H * W
    Lin = L + pad_total * (W + 1)

    B = max(1, min(batch_block, N))
    Npad = ((N + B - 1) // B) * B

    # Single wrapper-side data-movement op: flatten H,W (free) and zero-extend the flat
    # spatial axis so every depthwise tap is a constant lane offset in-kernel.
    # No NCHW<->NHWC transposes in either direction.
    x_flat = x_nchw.reshape(N, Cin, L)
    x_ext = jnp.pad(x_flat, ((0, Npad - N), (0, 0), (pb * (W + 1), pe * (W + 1))))

    wdw = w_dw.reshape(Cin, KH * KW)                # (C, K*K), tap = kh*KW + kw
    wpw = w_pw.reshape(Cout, Cin)                   # (Cout, C) -- already matmul-ready
    gamma2 = gamma.reshape(Cin, 1)
    beta2 = beta.reshape(Cin, 1)

    gs = Cin // groups
    cidx = jnp.arange(Cin, dtype=jnp.int32)
    grp = (cidx[:, None] // gs == cidx[None, :] // gs).astype(jnp.float32)  # hoisted; unused if gs==1

    kernel = functools.partial(_sepconv_kernel, H=H, W=W, KH=KH, KW=KW,
                               dilation=dilation, groups=groups, eps=eps,
                               pointwise_bf16=pointwise_bf16)

    # Rough VMEM budget: double-buffered in/out blocks + f32 intermediates.
    blk_in = B * Cin * Lin * 4
    blk_out = B * Cout * L * 4
    inter = 6 * B * Cin * L * 4 + blk_out
    vmem_limit = int(min(max(32 * 2**20, 2 * (blk_in + blk_out) + inter), 96 * 2**20))
    # TODO(synk): for production shapes (e.g. H=W=64, C>=256) add an H-tile grid axis with a
    # (KH-1)*dilation halo and a two-phase GroupNorm (stats accumulate + finalize) so the
    # per-step blocks fit v7x's smaller VMEM and the pipeline has steps to double-buffer.

    out_flat = pl.pallas_call(
        kernel,
        out_shape=jax.ShapeDtypeStruct((Npad, Cout, L), x_nchw.dtype),
        grid_spec=pltpu.PrefetchScalarGridSpec(
            num_scalar_prefetch=0,
            grid=(Npad // B,),
            in_specs=[
                pl.BlockSpec((B, Cin, Lin), lambda nb: (nb, 0, 0)),
                pl.BlockSpec((Cin, KH * KW), lambda nb: (0, 0)),
                pl.BlockSpec((Cin, 1), lambda nb: (0, 0)),
                pl.BlockSpec((Cin, 1), lambda nb: (0, 0)),
                pl.BlockSpec((Cout, Cin), lambda nb: (0, 0)),
                pl.BlockSpec((Cin, Cin), lambda nb: (0, 0)),
            ],
            out_specs=pl.BlockSpec((B, Cout, L), lambda nb: (nb, 0, 0)),
        ),
        compiler_params=pltpu.CompilerParams(
            dimension_semantics=("parallel",),
            vmem_limit_bytes=vmem_limit),
    )(x_ext, wdw, gamma2, beta2, wpw, grp)

    out = out_flat if Npad == N else out_flat[:N]
    return out.reshape(N, Cout, H, W)               # metadata-only reshape back to NCHW


def _reference(x, w_dw, gamma, beta, w_pw, *, kernel_size=3, dilation=1,
               groups=32, eps=1e-5):
    """Pure-JAX reference (NCHW) mirroring the PyTorch module."""
    k_eff = kernel_size + (kernel_size - 1) * (dilation - 1)
    pt = k_eff - 1
    pb, pe = pt // 2, pt - pt // 2
    xp = jnp.pad(x, ((0, 0), (0, 0), (pb, pe), (pb, pe)))
    Cin = x.shape[1]
    y = lax.conv_general_dilated(
        xp, w_dw, window_strides=(1, 1), padding='VALID',
        rhs_dilation=(dilation, dilation),
        dimension_numbers=('NCHW', 'OIHW', 'NCHW'),
        feature_group_count=Cin)
    N, C, H, W = y.shape
    yg = y.reshape(N, groups, C // groups, H, W)
    mean = yg.mean(axis=(2, 3, 4), keepdims=True)
    var = ((yg - mean) ** 2).mean(axis=(2, 3, 4), keepdims=True)
    yn = ((yg - mean) / jnp.sqrt(var + eps)).reshape(N, C, H, W)
    yn = yn * gamma.reshape(1, C, 1, 1) + beta.reshape(1, C, 1, 1)
    out = lax.conv_general_dilated(
        yn, w_pw, window_strides=(1, 1), padding='VALID',
        dimension_numbers=('NCHW', 'OIHW', 'NCHW'))
    return out


if __name__ == "__main__":
    # module config: inplanes=32 (divisible by groups=32), planes=64, kernel=3
    N, Cin, H, W = 2, 32, 16, 16
    Cout, K, groups = 64, 3, 32

    key = jax.random.PRNGKey(0)
    k1, k2, k3, k4, k5 = jax.random.split(key, 5)
    x = jax.random.normal(k1, (N, Cin, H, W), jnp.float32)
    w_dw = jax.random.normal(k2, (Cin, 1, K, K), jnp.float32) * 0.2     # depthwise conv weight
    w_pw = jax.random.normal(k3, (Cout, Cin, 1, 1), jnp.float32) * 0.1  # pointwise conv weight
    gamma = 1.0 + 0.1 * jax.random.normal(k4, (Cin,), jnp.float32)      # GroupNorm weight
    beta = 0.1 * jax.random.normal(k5, (Cin,), jnp.float32)             # GroupNorm bias

    ref = jax.block_until_ready(
        _reference(x, w_dw, gamma, beta, w_pw,
                   kernel_size=K, dilation=1, groups=groups))

    # full-f32 path: tight tolerance
    out = jax.block_until_ready(
        separable_conv2d(x, w_dw, gamma, beta, w_pw, kernel_size=K, stride=1,
                         dilation=1, groups=groups, pointwise_bf16=False))
    assert out.shape == (N, Cout, H, W), out.shape
    np.testing.assert_allclose(np.asarray(out), np.asarray(ref), rtol=5e-3, atol=5e-3)

    # bf16 operands for the pointwise MXU matmul (v6e/v7x recommendation), f32 accumulate
    out_bf = jax.block_until_ready(
        separable_conv2d(x, w_dw, gamma, beta, w_pw, kernel_size=K, stride=1,
                         dilation=1, groups=groups, pointwise_bf16=True))
    np.testing.assert_allclose(np.asarray(out_bf), np.asarray(ref), rtol=2e-2, atol=2e-2)

    print("KERNEL_OK")
</pallas_src>

<mosaic_0001>
module attributes {stable_mosaic.version = 11 : i64} {
  func.func @_sepconv_kernel(%arg0: i32, %arg1: memref<2x32x290xf32, #tpu.memory_space<vmem>>, %arg2: memref<32x9xf32, #tpu.memory_space<vmem>>, %arg3: memref<32x1xf32, #tpu.memory_space<vmem>>, %arg4: memref<32x1xf32, #tpu.memory_space<vmem>>, %arg5: memref<64x32xf32, #tpu.memory_space<vmem>>, %arg6: memref<32x32xf32, #tpu.memory_space<vmem>>, %arg7: memref<2x64x256xf32, #tpu.memory_space<vmem>>) attributes {dimension_semantics = [#tpu.dimension_semantics<parallel>], iteration_bounds = array<i64: 1>, scalar_prefetch = 0 : i64, scratch_operands = 0 : i64, tpu.core_type = #tpu.core_type<tc>, window_params = [{transform_indices = @transform_0, window_bounds = array<i64: 2, 32, 290>}, {pipeline_mode = #tpu.pipeline_mode<synchronous>, transform_indices = @transform_1, window_bounds = array<i64: 32, 9>}, {pipeline_mode = #tpu.pipeline_mode<synchronous>, transform_indices = @transform_2, window_bounds = array<i64: 32, 1>}, {pipeline_mode = #tpu.pipeline_mode<synchronous>, transform_indices = @transform_3, window_bounds = array<i64: 32, 1>}, {pipeline_mode = #tpu.pipeline_mode<synchronous>, transform_indices = @transform_4, window_bounds = array<i64: 64, 32>}, {pipeline_mode = #tpu.pipeline_mode<synchronous>, transform_indices = @transform_5, window_bounds = array<i64: 32, 32>}, {transform_indices = @transform_6, window_bounds = array<i64: 2, 64, 256>}]} {
    %0 = tpu.iota {dimensions = array<i32: 2>} : vector<1x1x256xi32>
    %c16_i32 = arith.constant 16 : i32
    %c0_i32 = arith.constant 0 : i32
    %1 = arith.cmpi eq, %c16_i32, %c0_i32 : i32
    %c1_i32 = arith.constant 1 : i32
    %2 = arith.select %1, %c1_i32, %c16_i32 : i32
    %3 = vector.broadcast %2 : i32 to vector<1x1x256xi32>
    %4 = arith.remsi %0, %3 : vector<1x1x256xi32>
    %c0_i32_0 = arith.constant 0 : i32
    %5 = vector.broadcast %c0_i32_0 : i32 to vector<1x1x256xi32>
    %6 = arith.cmpi ne, %4, %5 : vector<1x1x256xi32>
    %c0_i32_1 = arith.constant 0 : i32
    %7 = vector.broadcast %c0_i32_1 : i32 to vector<1x1x256xi32>
    %8 = arith.cmpi slt, %4, %7 : vector<1x1x256xi32>
    %c0_i32_2 = arith.constant 0 : i32
    %9 = arith.cmpi slt, %2, %c0_i32_2 : i32
    %10 = vector.broadcast %9 : i1 to vector<1x1x256xi1>
    %11 = vector.broadcast %10 : vector<1x1x256xi1> to vector<1x1x256xi1>
    %12 = arith.xori %8, %11 : vector<1x1x256xi1>
    %13 = arith.andi %12, %6 : vector<1x1x256xi1>
    %14 = vector.broadcast %2 : i32 to vector<1x1x256xi32>
    %15 = arith.addi %4, %14 : vector<1x1x256xi32>
    %16 = arith.select %13, %15, %4 : vector<1x1x256xi1>, vector<1x1x256xi32>
    %c-1_i32 = arith.constant -1 : i32
    %17 = vector.broadcast %c-1_i32 : i32 to vector<1x1x256xi32>
    %18 = arith.addi %16, %17 : vector<1x1x256xi32>
    %c0_i32_3 = arith.constant 0 : i32
    %19 = vector.broadcast %c0_i32_3 : i32 to vector<1x1x256xi32>
    %20 = arith.cmpi sge, %18, %19 : vector<1x1x256xi32>
    %c-1_i32_4 = arith.constant -1 : i32
    %21 = vector.broadcast %c-1_i32_4 : i32 to vector<1x1x256xi32>
    %22 = arith.addi %16, %21 : vector<1x1x256xi32>
    %c16_i32_5 = arith.constant 16 : i32
    %23 = vector.broadcast %c16_i32_5 : i32 to vector<1x1x256xi32>
    %24 = arith.cmpi slt, %22, %23 : vector<1x1x256xi32>
    %25 = arith.andi %20, %24 : vector<1x1x256xi1>
    %c1_i32_6 = arith.constant 1 : i32
    %26 = vector.broadcast %c1_i32_6 : i32 to vector<1x1x256xi32>
    %27 = arith.addi %16, %26 : vector<1x1x256xi32>
    %c0_i32_7 = arith.constant 0 : i32
    %28 = vector.broadcast %c0_i32_7 : i32 to vector<1x1x256xi32>
    %29 = arith.cmpi sge, %27, %28 : vector<1x1x256xi32>
    %c1_i32_8 = arith.constant 1 : i32
    %30 = vector.broadcast %c1_i32_8 : i32 to vector<1x1x256xi32>
    %31 = arith.addi %16, %30 : vector<1x1x256xi32>
    %c16_i32_9 = arith.constant 16 : i32
    %32 = vector.broadcast %c16_i32_9 : i32 to vector<1x1x256xi32>
    %33 = arith.cmpi slt, %31, %32 : vector<1x1x256xi32>
    %34 = arith.andi %29, %33 : vector<1x1x256xi1>
    %c0 = arith.constant 0 : index
    %c0_10 = arith.constant 0 : index
    %35 = vector.load %arg2[%c0, %c0_10] : memref<32x9xf32, #tpu.memory_space<vmem>>, vector<32x9xf32>
    %cst = arith.constant 0.000000e+00 : f32
    %36 = vector.broadcast %cst : f32 to vector<2x32x256xf32>
    %c0_11 = arith.constant 0 : index
    %c0_12 = arith.constant 0 : index
    %c0_13 = arith.constant 0 : index
    %37 = vector.load %arg1[%c0_11, %c0_12, %c0_13] : memref<2x32x290xf32, #tpu.memory_space<vmem>>, vector<2x32x256xf32>
    %cst_14 = arith.constant 0.000000e+00 : f32
    %38 = vector.shape_cast %25 : vector<1x1x256xi1> to vector<1x1x256xi1>
    %39 = vector.broadcast %38 : vector<1x1x256xi1> to vector<2x32x256xi1>
    %40 = vector.broadcast %cst_14 : f32 to vector<2x32x256xf32>
    %41 = arith.select %39, %37, %40 : vector<2x32x256xi1>, vector<2x32x256xf32>
    %42 = vector.extract_strided_slice %35 {offsets = [0, 0], sizes = [32, 1], strides = [1, 1]} : vector<32x9xf32> to vector<32x1xf32>
    %43 = vector.shape_cast %42 : vector<32x1xf32> to vector<1x32x1xf32>
    %44 = vector.broadcast %43 : vector<1x32x1xf32> to vector<2x32x256xf32>
    %45 = arith.mulf %41, %44 : vector<2x32x256xf32>
    %46 = arith.addf %36, %45 : vector<2x32x256xf32>
    %c0_15 = arith.constant 0 : index
    %c0_16 = arith.constant 0 : index
    %c1 = arith.constant 1 : index
    %47 = vector.load %arg1[%c0_15, %c0_16, %c1] : memref<2x32x290xf32, #tpu.memory_space<vmem>>, vector<2x32x256xf32>
    %48 = vector.extract_strided_slice %35 {offsets = [0, 1], sizes = [32, 1], strides = [1, 1]} : vector<32x9xf32> to vector<32x1xf32>
    %49 = vector.shape_cast %48 : vector<32x1xf32> to vector<1x32x1xf32>
    %50 = vector.broadcast %49 : vector<1x32x1xf32> to vector<2x32x256xf32>
    %51 = arith.mulf %47, %50 : vector<2x32x256xf32>
    %52 = arith.addf %46, %51 : vector<2x32x256xf32>
    %c0_17 = arith.constant 0 : index
    %c0_18 = arith.constant 0 : index
    %c2 = arith.constant 2 : index
    %53 = vector.load %arg1[%c0_17, %c0_18, %c2] : memref<2x32x290xf32, #tpu.memory_space<vmem>>, vector<2x32x256xf32>
    %cst_19 = arith.constant 0.000000e+00 : f32
    %54 = vector.shape_cast %34 : vector<1x1x256xi1> to vector<1x1x256xi1>
    %55 = vector.broadcast %54 : vector<1x1x256xi1> to vector<2x32x256xi1>
    %56 = vector.broadcast %cst_19 : f32 to vector<2x32x256xf32>
    %57 = arith.select %55, %53, %56 : vector<2x32x256xi1>, vector<2x32x256xf32>
    %58 = vector.extract_strided_slice %35 {offsets = [0, 2], sizes = [32, 1], strides = [1, 1]} : vector<32x9xf32> to vector<32x1xf32>
    %59 = vector.shape_cast %58 : vector<32x1xf32> to vector<1x32x1xf32>
    %60 = vector.broadcast %59 : vector<1x32x1xf32> to vector<2x32x256xf32>
    %61 = arith.mulf %57, %60 : vector<2x32x256xf32>
    %62 = arith.addf %52, %61 : vector<2x32x256xf32>
    %c0_20 = arith.constant 0 : index
    %c0_21 = arith.constant 0 : index
    %c16 = arith.constant 16 : index
    %63 = vector.load %arg1[%c0_20, %c0_21, %c16] : memref<2x32x290xf32, #tpu.memory_space<vmem>>, vector<2x32x256xf32>
    %cst_22 = arith.constant 0.000000e+00 : f32
    %64 = vector.shape_cast %25 : vector<1x1x256xi1> to vector<1x1x256xi1>
    %65 = vector.broadcast %64 : vector<1x1x256xi1> to vector<2x32x256xi1>
    %66 = vector.broadcast %cst_22 : f32 to vector<2x32x256xf32>
    %67 = arith.select %65, %63, %66 : vector<2x32x256xi1>, vector<2x32x256xf32>
    %68 = vector.extract_strided_slice %35 {offsets = [0, 3], sizes = [32, 1], strides = [1, 1]} : vector<32x9xf32> to vector<32x1xf32>
    %69 = vector.shape_cast %68 : vector<32x1xf32> to vector<1x32x1xf32>
    %70 = vector.broadcast %69 : vector<1x32x1xf32> to vector<2x32x256xf32>
    %71 = arith.mulf %67, %70 : vector<2x32x256xf32>
    %72 = arith.addf %62, %71 : vector<2x32x256xf32>
    %c0_23 = arith.constant 0 : index
    %c0_24 = arith.constant 0 : index
    %c17 = arith.constant 17 : index
    %73 = vector.load %arg1[%c0_23, %c0_24, %c17] : memref<2x32x290xf32, #tpu.memory_space<vmem>>, vector<2x32x256xf32>
    %74 = vector.extract_strided_slice %35 {offsets = [0, 4], sizes = [32, 1], strides = [1, 1]} : vector<32x9xf32> to vector<32x1xf32>
    %75 = vector.shape_cast %74 : vector<32x1xf32> to vector<1x32x1xf32>
    %76 = vector.broadcast %75 : vector<1x32x1xf32> to vector<2x32x256xf32>
    %77 = arith.mulf %73, %76 : vector<2x32x256xf32>
    %78 = arith.addf %72, %77 : vector<2x32x256xf32>
    %c0_25 = arith.constant 0 : index
    %c0_26 = arith.constant 0 : index
    %c18 = arith.constant 18 : index
    %79 = vector.load %arg1[%c0_25, %c0_26, %c18] : memref<2x32x290xf32, #tpu.memory_space<vmem>>, vector<2x32x256xf32>
    %cst_27 = arith.constant 0.000000e+00 : f32
    %80 = vector.shape_cast %34 : vector<1x1x256xi1> to vector<1x1x256xi1>
    %81 = vector.broadcast %80 : vector<1x1x256xi1> to vector<2x32x256xi1>
    %82 = vector.broadcast %cst_27 : f32 to vector<2x32x256xf32>
    %83 = arith.select %81, %79, %82 : vector<2x32x256xi1>, vector<2x32x256xf32>
    %84 = vector.extract_strided_slice %35 {offsets = [0, 5], sizes = [32, 1], strides = [1, 1]} : vector<32x9xf32> to vector<32x1xf32>
    %85 = vector.shape_cast %84 : vector<32x1xf32> to vector<1x32x1xf32>
    %86 = vector.broadcast %85 : vector<1x32x1xf32> to vector<2x32x256xf32>
    %87 = arith.mulf %83, %86 : vector<2x32x256xf32>
    %88 = arith.addf %78, %87 : vector<2x32x256xf32>
    %c0_28 = arith.constant 0 : index
    %c0_29 = arith.constant 0 : index
    %c32 = arith.constant 32 : index
    %89 = vector.load %arg1[%c0_28, %c0_29, %c32] : memref<2x32x290xf32, #tpu.memory_space<vmem>>, vector<2x32x256xf32>
    %cst_30 = arith.constant 0.000000e+00 : f32
    %90 = vector.shape_cast %25 : vector<1x1x256xi1> to vector<1x1x256xi1>
    %91 = vector.broadcast %90 : vector<1x1x256xi1> to vector<2x32x256xi1>
    %92 = vector.broadcast %cst_30 : f32 to vector<2x32x256xf32>
    %93 = arith.select %91, %89, %92 : vector<2x32x256xi1>, vector<2x32x256xf32>
    %94 = vector.extract_strided_slice %35 {offsets = [0, 6], sizes = [32, 1], strides = [1, 1]} : vector<32x9xf32> to vector<32x1xf32>
    %95 = vector.shape_cast %94 : vector<32x1xf32> to vector<1x32x1xf32>
    %96 = vector.broadcast %95 : vector<1x32x1xf32> to vector<2x32x256xf32>
    %97 = arith.mulf %93, %96 : vector<2x32x256xf32>
    %98 = arith.addf %88, %97 : vector<2x32x256xf32>
    %c0_31 = arith.constant 0 : index
    %c0_32 = arith.constant 0 : index
    %c33 = arith.constant 33 : index
    %99 = vector.load %arg1[%c0_31, %c0_32, %c33] : memref<2x32x290xf32, #tpu.memory_space<vmem>>, vector<2x32x256xf32>
    %100 = vector.extract_strided_slice %35 {offsets = [0, 7], sizes = [32, 1], strides = [1, 1]} : vector<32x9xf32> to vector<32x1xf32>
    %101 = vector.shape_cast %100 : vector<32x1xf32> to vector<1x32x1xf32>
    %102 = vector.broadcast %101 : vector<1x32x1xf32> to vector<2x32x256xf32>
    %103 = arith.mulf %99, %102 : vector<2x32x256xf32>
    %104 = arith.addf %98, %103 : vector<2x32x256xf32>
    %c0_33 = arith.constant 0 : index
    %c0_34 = arith.constant 0 : index
    %c34 = arith.constant 34 : index
    %105 = vector.load %arg1[%c0_33, %c0_34, %c34] : memref<2x32x290xf32, #tpu.memory_space<vmem>>, vector<2x32x256xf32>
    %cst_35 = arith.constant 0.000000e+00 : f32
    %106 = vector.shape_cast %34 : vector<1x1x256xi1> to vector<1x1x256xi1>
    %107 = vector.broadcast %106 : vector<1x1x256xi1> to vector<2x32x256xi1>
    %108 = vector.broadcast %cst_35 : f32 to vector<2x32x256xf32>
    %109 = arith.select %107, %105, %108 : vector<2x32x256xi1>, vector<2x32x256xf32>
    %110 = vector.extract_strided_slice %35 {offsets = [0, 8], sizes = [32, 1], strides = [1, 1]} : vector<32x9xf32> to vector<32x1xf32>
    %111 = vector.shape_cast %110 : vector<32x1xf32> to vector<1x32x1xf32>
    %112 = vector.broadcast %111 : vector<1x32x1xf32> to vector<2x32x256xf32>
    %113 = arith.mulf %109, %112 : vector<2x32x256xf32>
    %114 = arith.addf %104, %113 : vector<2x32x256xf32>
    %cst_36 = arith.constant dense<0.000000e+00> : vector<2x32xf32>
    %115 = vector.multi_reduction <add>, %114, %cst_36 [2] : vector<2x32x256xf32> to vector<2x32xf32>
    %116 = vector.shape_cast %115 : vector<2x32xf32> to vector<2x32x1xf32>
    %cst_37 = arith.constant 3.906250e-03 : f32
    %117 = vector.broadcast %cst_37 : f32 to vector<2x32x1xf32>
    %118 = arith.mulf %116, %117 : vector<2x32x1xf32>
    %119 = vector.broadcast %118 : vector<2x32x1xf32> to vector<2x32x256xf32>
    %120 = arith.subf %114, %119 : vector<2x32x256xf32>
    %121 = arith.mulf %120, %120 : vector<2x32x256xf32>
    %cst_38 = arith.constant dense<0.000000e+00> : vector<2x32xf32>
    %122 = vector.multi_reduction <add>, %121, %cst_38 [2] : vector<2x32x256xf32> to vector<2x32xf32>
    %123 = vector.shape_cast %122 : vector<2x32xf32> to vector<2x32x1xf32>
    %cst_39 = arith.constant 3.906250e-03 : f32
    %124 = vector.broadcast %cst_39 : f32 to vector<2x32x1xf32>
    %125 = arith.mulf %123, %124 : vector<2x32x1xf32>
    %cst_40 = arith.constant 9.99999974E-6 : f32
    %126 = vector.broadcast %cst_40 : f32 to vector<2x32x1xf32>
    %127 = arith.addf %125, %126 : vector<2x32x1xf32>
    %128 = math.rsqrt %127 : vector<2x32x1xf32>
    %c0_41 = arith.constant 0 : index
    %c0_42 = arith.constant 0 : index
    %129 = vector.load %arg3[%c0_41, %c0_42] : memref<32x1xf32, #tpu.memory_space<vmem>>, vector<32x1xf32>
    %130 = vector.shape_cast %129 : vector<32x1xf32> to vector<1x32x1xf32>
    %c0_43 = arith.constant 0 : index
    %c0_44 = arith.constant 0 : index
    %131 = vector.load %arg4[%c0_43, %c0_44] : memref<32x1xf32, #tpu.memory_space<vmem>>, vector<32x1xf32>
    %132 = vector.shape_cast %131 : vector<32x1xf32> to vector<1x32x1xf32>
    %133 = vector.broadcast %130 : vector<1x32x1xf32> to vector<2x32x1xf32>
    %134 = arith.mulf %128, %133 : vector<2x32x1xf32>
    %135 = vector.broadcast %134 : vector<2x32x1xf32> to vector<2x32x256xf32>
    %136 = arith.mulf %120, %135 : vector<2x32x256xf32>
    %137 = vector.broadcast %132 : vector<1x32x1xf32> to vector<2x32x256xf32>
    %138 = arith.addf %136, %137 : vector<2x32x256xf32>
    %c0_45 = arith.constant 0 : index
    %c0_46 = arith.constant 0 : index
    %139 = vector.load %arg5[%c0_45, %c0_46] : memref<64x32xf32, #tpu.memory_space<vmem>>, vector<64x32xf32>
    %140 = vector.extract_strided_slice %138 {offsets = [0, 0, 0], sizes = [1, 32, 256], strides = [1, 1, 1]} : vector<2x32x256xf32> to vector<1x32x256xf32>
    %141 = vector.shape_cast %140 : vector<1x32x256xf32> to vector<32x256xf32>
    %cst_47 = arith.constant dense<0.000000e+00> : vector<64x256xf32>
    %142 = tpu.matmul %139, %141, %cst_47 {dimension_numbers = #tpu.dot_dimension_numbers<[1], [0], [0], [1], [0, 0, 1, 1], [], []>} : vector<64x32xf32>, vector<32x256xf32>, vector<64x256xf32> -> vector<64x256xf32>
    %c0_48 = arith.constant 0 : index
    %c0_49 = arith.constant 0 : index
    %c0_50 = arith.constant 0 : index
    %143 = vector.load %arg7[%c0_48, %c0_49, %c0_50] : memref<2x64x256xf32, #tpu.memory_space<vmem>>, vector<1x64x256xf32>
    %144 = vector.shape_cast %143 : vector<1x64x256xf32> to vector<64x256xf32>
    %145 = vector.shape_cast %142 : vector<64x256xf32> to vector<1x64x256xf32>
    tpu.vector_store %arg7[%c0_48, %c0_49, %c0_50], %145 {strides = array<i32>} : memref<2x64x256xf32, #tpu.memory_space<vmem>>, vector<1x64x256xf32>,
    %146 = vector.extract_strided_slice %138 {offsets = [1, 0, 0], sizes = [1, 32, 256], strides = [1, 1, 1]} : vector<2x32x256xf32> to vector<1x32x256xf32>
    %147 = vector.shape_cast %146 : vector<1x32x256xf32> to vector<32x256xf32>
    %cst_51 = arith.constant dense<0.000000e+00> : vector<64x256xf32>
    %148 = tpu.matmul %139, %147, %cst_51 {dimension_numbers = #tpu.dot_dimension_numbers<[1], [0], [0], [1], [0, 0, 1, 1], [], []>} : vector<64x32xf32>, vector<32x256xf32>, vector<64x256xf32> -> vector<64x256xf32>
    %c1_52 = arith.constant 1 : index
    %c0_53 = arith.constant 0 : index
    %c0_54 = arith.constant 0 : index
    %149 = vector.load %arg7[%c1_52, %c0_53, %c0_54] : memref<2x64x256xf32, #tpu.memory_space<vmem>>, vector<1x64x256xf32>
    %150 = vector.shape_cast %149 : vector<1x64x256xf32> to vector<64x256xf32>
    %151 = vector.shape_cast %148 : vector<64x256xf32> to vector<1x64x256xf32>
    tpu.vector_store %arg7[%c1_52, %c0_53, %c0_54], %151 {strides = array<i32>} : memref<2x64x256xf32, #tpu.memory_space<vmem>>, vector<1x64x256xf32>,
    return
  }
  func.func @transform_0(%arg0: i32) -> (i32, i32, i32) {
    %c0_i32 = arith.constant 0 : i32
    %c0_i32_0 = arith.constant 0 : i32
    %c0_i32_1 = arith.constant 0 : i32
    return %arg0, %c0_i32, %c0_i32_0 : i32, i32, i32
  }
  func.func @transform_1(%arg0: i32) -> (i32, i32) {
    %c0_i32 = arith.constant 0 : i32
    %c0_i32_0 = arith.constant 0 : i32
    %c0_i32_1 = arith.constant 0 : i32
    return %c0_i32, %c0_i32_0 : i32, i32
  }
  func.func @transform_2(%arg0: i32) -> (i32, i32) {
    %c0_i32 = arith.constant 0 : i32
    %c0_i32_0 = arith.constant 0 : i32
    %c0_i32_1 = arith.constant 0 : i32
    return %c0_i32, %c0_i32_0 : i32, i32
  }
  func.func @transform_3(%arg0: i32) -> (i32, i32) {
    %c0_i32 = arith.constant 0 : i32
    %c0_i32_0 = arith.constant 0 : i32
    %c0_i32_1 = arith.constant 0 : i32
    return %c0_i32, %c0_i32_0 : i32, i32
  }
  func.func @transform_4(%arg0: i32) -> (i32, i32) {
    %c0_i32 = arith.constant 0 : i32
    %c0_i32_0 = arith.constant 0 : i32
    %c0_i32_1 = arith.constant 0 : i32
    return %c0_i32, %c0_i32_0 : i32, i32
  }
  func.func @transform_5(%arg0: i32) -> (i32, i32) {
    %c0_i32 = arith.constant 0 : i32
    %c0_i32_0 = arith.constant 0 : i32
    %c0_i32_1 = arith.constant 0 : i32
    return %c0_i32, %c0_i32_0 : i32, i32
  }
  func.func @transform_6(%arg0: i32) -> (i32, i32, i32) {
    %c0_i32 = arith.constant 0 : i32
    %c0_i32_0 = arith.constant 0 : i32
    %c0_i32_1 = arith.constant 0 : i32
    return %arg0, %c0_i32, %c0_i32_0 : i32, i32, i32
  }
}

</mosaic_0001>

<llo_original>
// kernel: tpu_custom_call.1
$region0: #{tpu_custom_call.1}
  #allocation0 [shape = 'u32[]', space=smem, size = 0x4, offset = 0x4, fixed_abs, tag = 'smem constant byte address 0x4 - core index']
  #allocation1 [shape = 'u32[144,128]{1,0:T(1,128)}', space=vmem, size = 0x12000, scoped, tag = 'internal scratch']
  %s0 = inlined_call_operand.vmem [shape: f32[2,32,290], index: 0, kind: input, shape index: {}]
  %s1 = inlined_call_operand.vmem [shape: f32[32,9], index: 1, kind: input, shape index: {}]
  %s2 = inlined_call_operand.vmem [shape: f32[32,1], index: 2, kind: input, shape index: {}]
  %s3 = inlined_call_operand.vmem [shape: f32[32,1], index: 3, kind: input, shape index: {}]
  %s4 = inlined_call_operand.vmem [shape: f32[64,32], index: 4, kind: input, shape index: {}]
  %s5 = inlined_call_operand.hbm [shape: f32[32,32], index: 5, kind: input, shape index: {}]
  %s6 = inlined_call_operand.hbm [shape: f32[2,64,256], index: 6, kind: output, shape index: {}]
  %s7 = sld [smem:[#allocation0]]
  $region38: #{tpu_custom_call.1} parent=0
    _
  %s9 = ssub.s32 1, %s7
  %s10 = scalar_select 0, %s9, %s7
  $region1: #{tpu_custom_call.1} parent=0
    #allocation2 [shape = 'u8[16384]{0}', space=vmem, size = 0x4000, scoped, tag = 'input window, operand 5, single buffered']
    #allocation3 [shape = 's32[1]{0}', space=sflag, size = 0x4, scoped, tag = 'scoped memory for tpu_custom_call.1']
    #allocation4 [shape = 's32[1]{0}', space=sflag, size = 0x4, scoped, tag = 'scoped memory for tpu_custom_call.1']
    #allocation5 [shape = 'u8[131072]{0}', space=vmem, size = 0x20000, scoped, tag = 'output window, operand 0, single buffered']
    %11 = vsyncpa [#allocation3], 0
    %12 = vsyncpa [#allocation4], 0
    // Predicated region
    $region2: #{tpu_custom_call.1} parent=1 // pred_check
      _
    $region3: #{tpu_custom_call.1} parent=1 // pred_check_branch
      %14 = sbr.rel (0) target = $region5
    $region4: #{tpu_custom_call.1} parent=1 // pred_region
      _
    $region5: #{tpu_custom_call.1} parent=1 // pred_fallthru
      _
    // Predicated region
    $region6: #{tpu_custom_call.1} parent=1 // pred_check
      _
    $region7: #{tpu_custom_call.1} parent=1 // pred_check_branch
      %16 = sbr.rel (0) target = $region9
    $region8: #{tpu_custom_call.1} parent=1 // pred_region
      _
    $region9: #{tpu_custom_call.1} parent=1 // pred_fallthru
      _
    // Predicated region
    $region10: #{tpu_custom_call.1} parent=1 // pred_check
      _
    $region11: #{tpu_custom_call.1} parent=1 // pred_check_branch
      %18 = sbr.rel (0) target = $region13
    $region12: #{tpu_custom_call.1} parent=1 // pred_region
      _
    $region13: #{tpu_custom_call.1} parent=1 // pred_fallthru
      _
    // Predicated region
    $region14: #{tpu_custom_call.1} parent=1 // pred_check
      _
    $region15: #{tpu_custom_call.1} parent=1 // pred_check_branch
      %20 = sbr.rel (0) target = $region17
    $region16: #{tpu_custom_call.1} parent=1 // pred_region
      _
    $region17: #{tpu_custom_call.1} parent=1 // pred_fallthru
      _
    // Predicated region
    $region18: #{tpu_custom_call.1} parent=1 // pred_check
      _
    $region19: #{tpu_custom_call.1} parent=1 // pred_check_branch
      %22 = sbr.rel (0) target = $region21
    $region20: #{tpu_custom_call.1} parent=1 // pred_region
      _
    $region21: #{tpu_custom_call.1} parent=1 // pred_fallthru
      _
    // Predicated region
    $region22: #{tpu_custom_call.1} parent=1 // pred_check
      _
    $region23: #{tpu_custom_call.1} parent=1 // pred_check_branch
      %24 = sbr.rel (0) target = $region25
    $region24: #{tpu_custom_call.1} parent=1 // pred_region
      %s26 = ssub.s32 512, 512
      %27 = vsyncadd [#allocation3], %s26
      %s28 = sshll.u32 [#allocation2], 4
      %s29 = int_to_ptr.vmem [resolvable:$true] %s28
      %34 = dma.hbm_to_vmem [thread:$0]  %s5, 512, %s29, [#allocation3], 128, 128, 8
    $region25: #{tpu_custom_call.1} parent=1 // pred_fallthru
      _
    // Predicated region
    $region26: #{tpu_custom_call.1} parent=1 // pred_check
      _
    $region27: #{tpu_custom_call.1} parent=1 // pred_check_branch
      %36 = sbr.rel (0) target = $region29
    $region28: #{tpu_custom_call.1} parent=1 // pred_region
      %37 = dma.done [#allocation3], 512
    $region29: #{tpu_custom_call.1} parent=1 // pred_fallthru
      _
    %v38 = vlaneseq
    %v39 = vand.u32 %v38, 127
    %v40 = vadd.s32 %v39, 128
    %vm41 = vcmp.lt.s32.totalorder %v39, 0
    %v42 = vsub.s32 0, %v39
    %v43 = vsel %vm41, %v42, %v39
    %v44 = vshrl.u32 %v43, 4
    %v45 = vand.u32 %v43, 15
    %v46 = vsub.s32 0, %v45
    %v47 = vsel %vm41, %v46, %v45
    %vm48 = vcmp.lt.s32.totalorder %v40, 0
    %v49 = vsub.s32 0, %v40
    %v50 = vsel %vm48, %v49, %v40
    %v51 = vshrl.u32 %v50, 4
    %v52 = vand.u32 %v50, 15
    %v53 = vsub.s32 0, %v52
    %v54 = vsel %vm48, %v53, %v52
    %vm55 = vcmp.ne.s32.totalorder %v47, 0
    %vm56 = vcmp.ne.s32.totalorder %v54, 0
    %vm57 = vcmp.lt.s32.totalorder %v47, 0
    %vm58 = vcmp.lt.s32.totalorder %v54, 0
    %vm59 = vmand %vm57, %vm55
    %vm60 = vmand %vm58, %vm56
    %v61 = vadd.s32 %v47, 16
    %v62 = vadd.s32 %v54, 16
    %v63 = vsel %vm59, %v61, %v47
    %v64 = vsel %vm60, %v62, %v54
    %v65 = vadd.s32 %v63, 4294967295
    %v66 = vadd.s32 %v64, 4294967295
    %vm67 = vcmp.ge.s32.totalorder %v65, 0
    %vm68 = vcmp.ge.s32.totalorder %v66, 0
    %vm69 = vcmp.lt.s32.totalorder %v65, 16
    %vm70 = vcmp.lt.s32.totalorder %v66, 16
    %vm71 = vmand %vm67, %vm69
    %vm72 = vmand %vm68, %vm70
    %v73 = vadd.s32 %v63, 1
    %v74 = vadd.s32 %v64, 1
    %vm75 = vcmp.ge.s32.totalorder %v73, 0
    %vm76 = vcmp.ge.s32.totalorder %v74, 0
    %vm77 = vcmp.lt.s32.totalorder %v73, 16
    %vm78 = vcmp.lt.s32.totalorder %v74, 16
    %vm79 = vmand %vm75, %vm77
    %vm80 = vmand %vm76, %vm78
    %v81 = vld [vmem:[%s1] sm:$0xff]
    %v82 = vld [vmem:[%s1 + $0x8] sm:$0xff]
    %v83 = vld [vmem:[%s1 + $0x10] sm:$0xff]
    %v84 = vld [vmem:[%s1 + $0x18] sm:$0xff]
    %v85 = vld [vmem:[%s0] sm:$0xff]
    %v86 = vld [vmem:[%s0 + $0x8] sm:$0xff]
    %v87 = vld [vmem:[%s0 + $0x18] sm:$0xff]
    %v88 = vld [vmem:[%s0 + $0x20] sm:$0xff]
    %v89 = vld [vmem:[%s0 + $0x30] sm:$0xff]
    %v90 = vld [vmem:[%s0 + $0x38] sm:$0xff]
    %v91 = vld [vmem:[%s0 + $0x48] sm:$0xff]
    %v92 = vld [vmem:[%s0 + $0x50] sm:$0xff]
    %v93 = vld [vmem:[%s0 + $0x60] sm:$0xff]
    %v94 = vld [vmem:[%s0 + $0x68] sm:$0xff]
    %v95 = vld [vmem:[%s0 + $0x78] sm:$0xff]
    %v96 = vld [vmem:[%s0 + $0x80] sm:$0xff]
    %v97 = vld [vmem:[%s0 + $0x90] sm:$0xff]
    %v98 = vld [vmem:[%s0 + $0x98] sm:$0xff]
    %v99 = vld [vmem:[%s0 + $0xa8] sm:$0xff]
    %v100 = vld [vmem:[%s0 + $0xb0] sm:$0xff]
    %v101 = vsel %vm71, 1, 0
    %v102 = vsel %vm72, 1, 0
    %vm103 = vcmp.eq.s32.totalorder %v101, 1
    %vm104 = vcmp.eq.s32.totalorder %v102, 1
    %v105 = vsel %vm103, %v85, 0.0
    %v106 = vsel %vm104, %v86, 0.0
    %v107 = vsel %vm103, %v87, 0.0
    %v108 = vsel %vm104, %v88, 0.0
    %v109 = vsel %vm103, %v89, 0.0
    %v110 = vsel %vm104, %v90, 0.0
    %v111 = vsel %vm103, %v91, 0.0
    %v112 = vsel %vm104, %v92, 0.0
    %v113 = vsel %vm103, %v93, 0.0
    %v114 = vsel %vm104, %v94, 0.0
    %v115 = vsel %vm103, %v95, 0.0
    %v116 = vsel %vm104, %v96, 0.0
    %v117 = vsel %vm103, %v97, 0.0
    %v118 = vsel %vm104, %v98, 0.0
    %v119 = vsel %vm103, %v99, 0.0
    %v120 = vsel %vm104, %v100, 0.0
    %122 = vset.pattern.permute.xlu0 0
    %123 = vperm.xlu0 %122, %v81
    %v124 = vpop.permute.xlu0 %123
    %127 = vset.pattern.permute.xlu0 0
    %128 = vperm.xlu0 %127, %v82
    %v129 = vpop.permute.xlu0 %128
    %132 = vset.pattern.permute.xlu0 0
    %133 = vperm.xlu0 %132, %v83
    %v134 = vpop.permute.xlu0 %133
    %137 = vset.pattern.permute.xlu0 0
    %138 = vperm.xlu0 %137, %v84
    %v139 = vpop.permute.xlu0 %138
    %v141 = vmul.f32 %v105, %v124
    %v142 = vmul.f32 %v106, %v124
    %v143 = vmul.f32 %v107, %v129
    %v144 = vmul.f32 %v108, %v129
    %v145 = vmul.f32 %v109, %v134
    %v146 = vmul.f32 %v110, %v134
    %v147 = vmul.f32 %v111, %v139
    %v148 = vmul.f32 %v112, %v139
    %v149 = vmul.f32 %v113, %v124
    %v150 = vmul.f32 %v114, %v124
    %v151 = vmul.f32 %v115, %v129
    %v152 = vmul.f32 %v116, %v129
    %v153 = vmul.f32 %v117, %v134
    %v154 = vmul.f32 %v118, %v134
    %v155 = vmul.f32 %v119, %v139
    %v156 = vmul.f32 %v120, %v139
    %v157 = vadd.f32 %v141, 0.0
    %v158 = vadd.f32 %v142, 0.0
    %v159 = vadd.f32 %v143, 0.0
    %v160 = vadd.f32 %v144, 0.0
    %v161 = vadd.f32 %v145, 0.0
    %v162 = vadd.f32 %v146, 0.0
    %v163 = vadd.f32 %v147, 0.0
    %v164 = vadd.f32 %v148, 0.0
    %v165 = vadd.f32 %v149, 0.0
    %v166 = vadd.f32 %v150, 0.0
    %v167 = vadd.f32 %v151, 0.0
    %v168 = vadd.f32 %v152, 0.0
    %v169 = vadd.f32 %v153, 0.0
    %v170 = vadd.f32 %v154, 0.0
    %v171 = vadd.f32 %v155, 0.0
    %v172 = vadd.f32 %v156, 0.0
    %v173 = vld [vmem:[%s0] sm:$0xff]
    %v174 = vld [vmem:[%s0 + $0x8] sm:$0xff]
    %v175 = vld [vmem:[%s0 + $0x10] sm:$0xff]
    %v176 = vld [vmem:[%s0 + $0x18] sm:$0xff]
    %v177 = vld [vmem:[%s0 + $0x20] sm:$0xff]
    %v178 = vld [vmem:[%s0 + $0x28] sm:$0xff]
    %v179 = vld [vmem:[%s0 + $0x30] sm:$0xff]
    %v180 = vld [vmem:[%s0 + $0x38] sm:$0xff]
    %v181 = vld [vmem:[%s0 + $0x40] sm:$0xff]
    %v182 = vld [vmem:[%s0 + $0x48] sm:$0xff]
    %v183 = vld [vmem:[%s0 + $0x50] sm:$0xff]
    %v184 = vld [vmem:[%s0 + $0x58] sm:$0xff]
    %v185 = vld [vmem:[%s0 + $0x60] sm:$0xff]
    %v186 = vld [vmem:[%s0 + $0x68] sm:$0xff]
    %v187 = vld [vmem:[%s0 + $0x70] sm:$0xff]
    %v188 = vld [vmem:[%s0 + $0x78] sm:$0xff]
    %v189 = vld [vmem:[%s0 + $0x80] sm:$0xff]
    %v190 = vld [vmem:[%s0 + $0x88] sm:$0xff]
    %v191 = vld [vmem:[%s0 + $0x90] sm:$0xff]
    %v192 = vld [vmem:[%s0 + $0x98] sm:$0xff]
    %v193 = vld [vmem:[%s0 + $0xa0] sm:$0xff]
    %v194 = vld [vmem:[%s0 + $0xa8] sm:$0xff]
    %v195 = vld [vmem:[%s0 + $0xb0] sm:$0xff]
    %v196 = vld [vmem:[%s0 + $0xb8] sm:$0xff]
    %197 = vset.pattern.permute.xlu0 1
    %198 = vperm.xlu0 %197, %v81
    %v199 = vpop.permute.xlu0 %198
    %201 = vset.pattern.permute.xlu0 1
    %202 = vperm.xlu0 %201, %v82
    %v203 = vpop.permute.xlu0 %202
    %205 = vset.pattern.permute.xlu0 1
    %206 = vperm.xlu0 %205, %v83
    %v207 = vpop.permute.xlu0 %206
    %209 = vset.pattern.permute.xlu0 1
    %210 = vperm.xlu0 %209, %v84
    %v211 = vpop.permute.xlu0 %210
    %v213 = vmul.f32 %v173, %v199
    %v214 = vmul.f32 %v174, %v199
    %v215 = vmul.f32 %v175, %v199
    %v216 = vmul.f32 %v176, %v203
    %v217 = vmul.f32 %v177, %v203
    %v218 = vmul.f32 %v178, %v203
    %v219 = vmul.f32 %v179, %v207
    %v220 = vmul.f32 %v180, %v207
    %v221 = vmul.f32 %v181, %v207
    %v222 = vmul.f32 %v182, %v211
    %v223 = vmul.f32 %v183, %v211
    %v224 = vmul.f32 %v184, %v211
    %v225 = vmul.f32 %v185, %v199
    %v226 = vmul.f32 %v186, %v199
    %v227 = vmul.f32 %v187, %v199
    %v228 = vmul.f32 %v188, %v203
    %v229 = vmul.f32 %v189, %v203
    %v230 = vmul.f32 %v190, %v203
    %v231 = vmul.f32 %v191, %v207
    %v232 = vmul.f32 %v192, %v207
    %v233 = vmul.f32 %v193, %v207
    %v234 = vmul.f32 %v194, %v211
    %v235 = vmul.f32 %v195, %v211
    %v236 = vmul.f32 %v196, %v211
    %261 = vrot.lane.b32.xlu0 %v213, 127
    %v262 = vpop.permute.xlu0 %261
    %263 = vrot.lane.b32.xlu0 %v214, 127
    %v264 = vpop.permute.xlu0 %263
    %265 = vrot.lane.b32.xlu0 %v215, 127
    %v266 = vpop.permute.xlu0 %265
    %267 = vrot.lane.b32.xlu0 %v216, 127
    %v268 = vpop.permute.xlu0 %267
    %269 = vrot.lane.b32.xlu0 %v217, 127
    %v270 = vpop.permute.xlu0 %269
    %271 = vrot.lane.b32.xlu0 %v218, 127
    %v272 = vpop.permute.xlu0 %271
    %273 = vrot.lane.b32.xlu0 %v219, 127
    %v274 = vpop.permute.xlu0 %273
    %275 = vrot.lane.b32.xlu0 %v220, 127
    %v276 = vpop.permute.xlu0 %275
    %277 = vrot.lane.b32.xlu0 %v221, 127
    %v278 = vpop.permute.xlu0 %277
    %279 = vrot.lane.b32.xlu0 %v222, 127
    %v280 = vpop.permute.xlu0 %279
    %281 = vrot.lane.b32.xlu0 %v223, 127
    %v282 = vpop.permute.xlu0 %281
    %283 = vrot.lane.b32.xlu0 %v224, 127
    %v284 = vpop.permute.xlu0 %283
    %285 = vrot.lane.b32.xlu0 %v225, 127
    %v286 = vpop.permute.xlu0 %285
    %287 = vrot.lane.b32.xlu0 %v226, 127
    %v288 = vpop.permute.xlu0 %287
    %289 = vrot.lane.b32.xlu0 %v227, 127
    %v290 = vpop.permute.xlu0 %289
    %291 = vrot.lane.b32.xlu0 %v228, 127
    %v292 = vpop.permute.xlu0 %291
    %293 = vrot.lane.b32.xlu0 %v229, 127
    %v294 = vpop.permute.xlu0 %293
    %295 = vrot.lane.b32.xlu0 %v230, 127
    %v296 = vpop.permute.xlu0 %295
    %297 = vrot.lane.b32.xlu0 %v231, 127
    %v298 = vpop.permute.xlu0 %297
    %299 = vrot.lane.b32.xlu0 %v232, 127
    %v300 = vpop.permute.xlu0 %299
    %301 = vrot.lane.b32.xlu0 %v233, 127
    %v302 = vpop.permute.xlu0 %301
    %303 = vrot.lane.b32.xlu0 %v234, 127
    %v304 = vpop.permute.xlu0 %303
    %305 = vrot.lane.b32.xlu0 %v235, 127
    %v306 = vpop.permute.xlu0 %305
    %307 = vrot.lane.b32.xlu0 %v236, 127
    %v308 = vpop.permute.xlu0 %307
    %vm309 = vcmask 1039360
    %v310 = vsel %vm309, %v262, %v264
    %v311 = vsel %vm309, %v264, %v266
    %v312 = vsel %vm309, %v268, %v270
    %v313 = vsel %vm309, %v270, %v272
    %v314 = vsel %vm309, %v274, %v276
    %v315 = vsel %vm309, %v276, %v278
    %v316 = vsel %vm309, %v280, %v282
    %v317 = vsel %vm309, %v282, %v284
    %v318 = vsel %vm309, %v286, %v288
    %v319 = vsel %vm309, %v288, %v290
    %v320 = vsel %vm309, %v292, %v294
    %v321 = vsel %vm309, %v294, %v296
    %v322 = vsel %vm309, %v298, %v300
    %v323 = vsel %vm309, %v300, %v302
    %v324 = vsel %vm309, %v304, %v306
    %v325 = vsel %vm309, %v306, %v308
    %v342 = vadd.f32 %v157, %v310
    %v343 = vadd.f32 %v158, %v311
    %v344 = vadd.f32 %v159, %v312
    %v345 = vadd.f32 %v160, %v313
    %v346 = vadd.f32 %v161, %v314
    %v347 = vadd.f32 %v162, %v315
    %v348 = vadd.f32 %v163, %v316
    %v349 = vadd.f32 %v164, %v317
    %v350 = vadd.f32 %v165, %v318
    %v351 = vadd.f32 %v166, %v319
    %v352 = vadd.f32 %v167, %v320
    %v353 = vadd.f32 %v168, %v321
    %v354 = vadd.f32 %v169, %v322
    %v355 = vadd.f32 %v170, %v323
    %v356 = vadd.f32 %v171, %v324
    %v357 = vadd.f32 %v172, %v325
    %v358 = vsel %vm79, 1, 0
    %v359 = vsel %vm80, 1, 0
    %vm360 = vcmp.eq.s32.totalorder %v358, 1
    %vm361 = vcmp.eq.s32.totalorder %v359, 1
    %386 = vrot.lane.b32.xlu0 %v173, 126
    %v387 = vpop.permute.xlu0 %386
    %388 = vrot.lane.b32.xlu0 %v174, 126
    %v389 = vpop.permute.xlu0 %388
    %390 = vrot.lane.b32.xlu0 %v175, 126
    %v391 = vpop.permute.xlu0 %390
    %392 = vrot.lane.b32.xlu0 %v176, 126
    %v393 = vpop.permute.xlu0 %392
    %394 = vrot.lane.b32.xlu0 %v177, 126
    %v395 = vpop.permute.xlu0 %394
    %396 = vrot.lane.b32.xlu0 %v178, 126
    %v397 = vpop.permute.xlu0 %396
    %398 = vrot.lane.b32.xlu0 %v179, 126
    %v399 = vpop.permute.xlu0 %398
    %400 = vrot.lane.b32.xlu0 %v180, 126
    %v401 = vpop.permute.xlu0 %400
    %402 = vrot.lane.b32.xlu0 %v181, 126
    %v403 = vpop.permute.xlu0 %402
    %404 = vrot.lane.b32.xlu0 %v182, 126
    %v405 = vpop.permute.xlu0 %404
    %406 = vrot.lane.b32.xlu0 %v183, 126
    %v407 = vpop.permute.xlu0 %406
    %408 = vrot.lane.b32.xlu0 %v184, 126
    %v409 = vpop.permute.xlu0 %408
    %410 = vrot.lane.b32.xlu0 %v185, 126
    %v411 = vpop.permute.xlu0 %410
    %412 = vrot.lane.b32.xlu0 %v186, 126
    %v413 = vpop.permute.xlu0 %412
    %414 = vrot.lane.b32.xlu0 %v187, 126
    %v415 = vpop.permute.xlu0 %414
    %416 = vrot.lane.b32.xlu0 %v188, 126
    %v417 = vpop.permute.xlu0 %416
    %418 = vrot.lane.b32.xlu0 %v189, 126
    %v419 = vpop.permute.xlu0 %418
    %420 = vrot.lane.b32.xlu0 %v190, 126
    %v421 = vpop.permute.xlu0 %420
    %422 = vrot.lane.b32.xlu0 %v191, 126
    %v423 = vpop.permute.xlu0 %422
    %424 = vrot.lane.b32.xlu0 %v192, 126
    %v425 = vpop.permute.xlu0 %424
    %426 = vrot.lane.b32.xlu0 %v193, 126
    %v427 = vpop.permute.xlu0 %426
    %428 = vrot.lane.b32.xlu0 %v194, 126
    %v429 = vpop.permute.xlu0 %428
    %430 = vrot.lane.b32.xlu0 %v195, 126
    %v431 = vpop.permute.xlu0 %430
    %432 = vrot.lane.b32.xlu0 %v196, 126
    %v433 = vpop.permute.xlu0 %432
    %vm434 = vcmask 1031168
    %v435 = vsel %vm434, %v387, %v389
    %v436 = vsel %vm434, %v389, %v391
    %v437 = vsel %vm434, %v393, %v395
    %v438 = vsel %vm434, %v395, %v397
    %v439 = vsel %vm434, %v399, %v401
    %v440 = vsel %vm434, %v401, %v403
    %v441 = vsel %vm434, %v405, %v407
    %v442 = vsel %vm434, %v407, %v409
    %v443 = vsel %vm434, %v411, %v413
    %v444 = vsel %vm434, %v413, %v415
    %v445 = vsel %vm434, %v417, %v419
    %v446 = vsel %vm434, %v419, %v421
    %v447 = vsel %vm434, %v423, %v425
    %v448 = vsel %vm434, %v425, %v427
    %v449 = vsel %vm434, %v429, %v431
    %v450 = vsel %vm434, %v431, %v433
    %v467 = vsel %vm360, %v435, 0.0
    %v468 = vsel %vm361, %v436, 0.0
    %v469 = vsel %vm360, %v437, 0.0
    %v470 = vsel %vm361, %v438, 0.0
    %v471 = vsel %vm360, %v439, 0.0
    %v472 = vsel %vm361, %v440, 0.0
    %v473 = vsel %vm360, %v441, 0.0
    %v474 = vsel %vm361, %v442, 0.0
    %v475 = vsel %vm360, %v443, 0.0
    %v476 = vsel %vm361, %v444, 0.0
    %v477 = vsel %vm360, %v445, 0.0
    %v478 = vsel %vm361, %v446, 0.0
    %v479 = vsel %vm360, %v447, 0.0
    %v480 = vsel %vm361, %v448, 0.0
    %v481 = vsel %vm360, %v449, 0.0
    %v482 = vsel %vm361, %v450, 0.0
    %483 = vset.pattern.permute.xlu0 2
    %484 = vperm.xlu0 %483, %v81
    %v485 = vpop.permute.xlu0 %484
    %487 = vset.pattern.permute.xlu0 2
    %488 = vperm.xlu0 %487, %v82
    %v489 = vpop.permute.xlu0 %488
    %491 = vset.pattern.permute.xlu0 2
    %492 = vperm.xlu0 %491, %v83
    %v493 = vpop.permute.xlu0 %492
    %495 = vset.pattern.permute.xlu0 2
    %496 = vperm.xlu0 %495, %v84
    %v497 = vpop.permute.xlu0 %496
    %v499 = vmul.f32 %v467, %v485
    %v500 = vmul.f32 %v468, %v485
    %v501 = vmul.f32 %v469, %v489
    %v502 = vmul.f32 %v470, %v489
    %v503 = vmul.f32 %v471, %v493
    %v504 = vmul.f32 %v472, %v493
    %v505 = vmul.f32 %v473, %v497
    %v506 = vmul.f32 %v474, %v497
    %v507 = vmul.f32 %v475, %v485
    %v508 = vmul.f32 %v476, %v485
    %v509 = vmul.f32 %v477, %v489
    %v510 = vmul.f32 %v478, %v489
    %v511 = vmul.f32 %v479, %v493
    %v512 = vmul.f32 %v480, %v493
    %v513 = vmul.f32 %v481, %v497
    %v514 = vmul.f32 %v482, %v497
    %v515 = vadd.f32 %v342, %v499
    %v516 = vadd.f32 %v343, %v500
    %v517 = vadd.f32 %v344, %v501
    %v518 = vadd.f32 %v345, %v502
    %v519 = vadd.f32 %v346, %v503
    %v520 = vadd.f32 %v347, %v504
    %v521 = vadd.f32 %v348, %v505
    %v522 = vadd.f32 %v349, %v506
    %v523 = vadd.f32 %v350, %v507
    %v524 = vadd.f32 %v351, %v508
    %v525 = vadd.f32 %v352, %v509
    %v526 = vadd.f32 %v353, %v510
    %v527 = vadd.f32 %v354, %v511
    %v528 = vadd.f32 %v355, %v512
    %v529 = vadd.f32 %v356, %v513
    %v530 = vadd.f32 %v357, %v514
    %531 = vrot.lane.b32.xlu0 %v173, 112
    %v532 = vpop.permute.xlu0 %531
    %533 = vrot.lane.b32.xlu0 %v174, 112
    %v534 = vpop.permute.xlu0 %533
    %535 = vrot.lane.b32.xlu0 %v175, 112
    %v536 = vpop.permute.xlu0 %535
    %537 = vrot.lane.b32.xlu0 %v176, 112
    %v538 = vpop.permute.xlu0 %537
    %539 = vrot.lane.b32.xlu0 %v177, 112
    %v540 = vpop.permute.xlu0 %539
    %541 = vrot.lane.b32.xlu0 %v178, 112
    %v542 = vpop.permute.xlu0 %541
    %543 = vrot.lane.b32.xlu0 %v179, 112
    %v544 = vpop.permute.xlu0 %543
    %545 = vrot.lane.b32.xlu0 %v180, 112
    %v546 = vpop.permute.xlu0 %545
    %547 = vrot.lane.b32.xlu0 %v181, 112
    %v548 = vpop.permute.xlu0 %547
    %549 = vrot.lane.b32.xlu0 %v182, 112
    %v550 = vpop.permute.xlu0 %549
    %551 = vrot.lane.b32.xlu0 %v183, 112
    %v552 = vpop.permute.xlu0 %551
    %553 = vrot.lane.b32.xlu0 %v184, 112
    %v554 = vpop.permute.xlu0 %553
    %555 = vrot.lane.b32.xlu0 %v185, 112
    %v556 = vpop.permute.xlu0 %555
    %557 = vrot.lane.b32.xlu0 %v186, 112
    %v558 = vpop.permute.xlu0 %557
    %559 = vrot.lane.b32.xlu0 %v187, 112
    %v560 = vpop.permute.xlu0 %559
    %561 = vrot.lane.b32.xlu0 %v188, 112
    %v562 = vpop.permute.xlu0 %561
    %563 = vrot.lane.b32.xlu0 %v189, 112
    %v564 = vpop.permute.xlu0 %563
    %565 = vrot.lane.b32.xlu0 %v190, 112
    %v566 = vpop.permute.xlu0 %565
    %567 = vrot.lane.b32.xlu0 %v191, 112
    %v568 = vpop.permute.xlu0 %567
    %569 = vrot.lane.b32.xlu0 %v192, 112
    %v570 = vpop.permute.xlu0 %569
    %571 = vrot.lane.b32.xlu0 %v193, 112
    %v572 = vpop.permute.xlu0 %571
    %573 = vrot.lane.b32.xlu0 %v194, 112
    %v574 = vpop.permute.xlu0 %573
    %575 = vrot.lane.b32.xlu0 %v195, 112
    %v576 = vpop.permute.xlu0 %575
    %577 = vrot.lane.b32.xlu0 %v196, 112
    %v578 = vpop.permute.xlu0 %577
    %vm579 = vcmask 916480
    %v580 = vsel %vm579, %v532, %v534
    %v581 = vsel %vm579, %v534, %v536
    %v582 = vsel %vm579, %v538, %v540
    %v583 = vsel %vm579, %v540, %v542
    %v584 = vsel %vm579, %v544, %v546
    %v585 = vsel %vm579, %v546, %v548
    %v586 = vsel %vm579, %v550, %v552
    %v587 = vsel %vm579, %v552, %v554
    %v588 = vsel %vm579, %v556, %v558
    %v589 = vsel %vm579, %v558, %v560
    %v590 = vsel %vm579, %v562, %v564
    %v591 = vsel %vm579, %v564, %v566
    %v592 = vsel %vm579, %v568, %v570
    %v593 = vsel %vm579, %v570, %v572
    %v594 = vsel %vm579, %v574, %v576
    %v595 = vsel %vm579, %v576, %v578
    %v612 = vsel %vm103, %v580, 0.0
    %v613 = vsel %vm104, %v581, 0.0
    %v614 = vsel %vm103, %v582, 0.0
    %v615 = vsel %vm104, %v583, 0.0
    %v616 = vsel %vm103, %v584, 0.0
    %v617 = vsel %vm104, %v585, 0.0
    %v618 = vsel %vm103, %v586, 0.0
    %v619 = vsel %vm104, %v587, 0.0
    %v620 = vsel %vm103, %v588, 0.0
    %v621 = vsel %vm104, %v589, 0.0
    %v622 = vsel %vm103, %v590, 0.0
    %v623 = vsel %vm104, %v591, 0.0
    %v624 = vsel %vm103, %v592, 0.0
    %v625 = vsel %vm104, %v593, 0.0
    %v626 = vsel %vm103, %v594, 0.0
    %v627 = vsel %vm104, %v595, 0.0
    %628 = vset.pattern.permute.xlu0 3
    %629 = vperm.xlu0 %628, %v81
    %v630 = vpop.permute.xlu0 %629
    %632 = vset.pattern.permute.xlu0 3
    %633 = vperm.xlu0 %632, %v82
    %v634 = vpop.permute.xlu0 %633
    %636 = vset.pattern.permute.xlu0 3
    %637 = vperm.xlu0 %636, %v83
    %v638 = vpop.permute.xlu0 %637
    %640 = vset.pattern.permute.xlu0 3
    %641 = vperm.xlu0 %640, %v84
    %v642 = vpop.permute.xlu0 %641
    %v644 = vmul.f32 %v612, %v630
    %v645 = vmul.f32 %v613, %v630
    %v646 = vmul.f32 %v614, %v634
    %v647 = vmul.f32 %v615, %v634
    %v648 = vmul.f32 %v616, %v638
    %v649 = vmul.f32 %v617, %v638
    %v650 = vmul.f32 %v618, %v642
    %v651 = vmul.f32 %v619, %v642
    %v652 = vmul.f32 %v620, %v630
    %v653 = vmul.f32 %v621, %v630
    %v654 = vmul.f32 %v622, %v634
    %v655 = vmul.f32 %v623, %v634
    %v656 = vmul.f32 %v624, %v638
    %v657 = vmul.f32 %v625, %v638
    %v658 = vmul.f32 %v626, %v642
    %v659 = vmul.f32 %v627, %v642
    %v660 = vadd.f32 %v515, %v644
    %v661 = vadd.f32 %v516, %v645
    %v662 = vadd.f32 %v517, %v646
    %v663 = vadd.f32 %v518, %v647
    %v664 = vadd.f32 %v519, %v648
    %v665 = vadd.f32 %v520, %v649
    %v666 = vadd.f32 %v521, %v650
    %v667 = vadd.f32 %v522, %v651
    %v668 = vadd.f32 %v523, %v652
    %v669 = vadd.f32 %v524, %v653
    %v670 = vadd.f32 %v525, %v654
    %v671 = vadd.f32 %v526, %v655
    %v672 = vadd.f32 %v527, %v656
    %v673 = vadd.f32 %v528, %v657
    %v674 = vadd.f32 %v529, %v658
    %v675 = vadd.f32 %v530, %v659
    %676 = vset.pattern.permute.xlu0 4
    %677 = vperm.xlu0 %676, %v81
    %v678 = vpop.permute.xlu0 %677
    %680 = vset.pattern.permute.xlu0 4
    %681 = vperm.xlu0 %680, %v82
    %v682 = vpop.permute.xlu0 %681
    %684 = vset.pattern.permute.xlu0 4
    %685 = vperm.xlu0 %684, %v83
    %v686 = vpop.permute.xlu0 %685
    %688 = vset.pattern.permute.xlu0 4
    %689 = vperm.xlu0 %688, %v84
    %v690 = vpop.permute.xlu0 %689
    %v692 = vmul.f32 %v173, %v678
    %v693 = vmul.f32 %v174, %v678
    %v694 = vmul.f32 %v175, %v678
    %v695 = vmul.f32 %v176, %v682
    %v696 = vmul.f32 %v177, %v682
    %v697 = vmul.f32 %v178, %v682
    %v698 = vmul.f32 %v179, %v686
    %v699 = vmul.f32 %v180, %v686
    %v700 = vmul.f32 %v181, %v686
    %v701 = vmul.f32 %v182, %v690
    %v702 = vmul.f32 %v183, %v690
    %v703 = vmul.f32 %v184, %v690
    %v704 = vmul.f32 %v185, %v678
    %v705 = vmul.f32 %v186, %v678
    %v706 = vmul.f32 %v187, %v678
    %v707 = vmul.f32 %v188, %v682
    %v708 = vmul.f32 %v189, %v682
    %v709 = vmul.f32 %v190, %v682
    %v710 = vmul.f32 %v191, %v686
    %v711 = vmul.f32 %v192, %v686
    %v712 = vmul.f32 %v193, %v686
    %v713 = vmul.f32 %v194, %v690
    %v714 = vmul.f32 %v195, %v690
    %v715 = vmul.f32 %v196, %v690
    %740 = vrot.lane.b32.xlu0 %v692, 111
    %v741 = vpop.permute.xlu0 %740
    %742 = vrot.lane.b32.xlu0 %v693, 111
    %v743 = vpop.permute.xlu0 %742
    %744 = vrot.lane.b32.xlu0 %v694, 111
    %v745 = vpop.permute.xlu0 %744
    %746 = vrot.lane.b32.xlu0 %v695, 111
    %v747 = vpop.permute.xlu0 %746
    %748 = vrot.lane.b32.xlu0 %v696, 111
    %v749 = vpop.permute.xlu0 %748
    %750 = vrot.lane.b32.xlu0 %v697, 111
    %v751 = vpop.permute.xlu0 %750
    %752 = vrot.lane.b32.xlu0 %v698, 111
    %v753 = vpop.permute.xlu0 %752
    %754 = vrot.lane.b32.xlu0 %v699, 111
    %v755 = vpop.permute.xlu0 %754
    %756 = vrot.lane.b32.xlu0 %v700, 111
    %v757 = vpop.permute.xlu0 %756
    %758 = vrot.lane.b32.xlu0 %v701, 111
    %v759 = vpop.permute.xlu0 %758
    %760 = vrot.lane.b32.xlu0 %v702, 111
    %v761 = vpop.permute.xlu0 %760
    %762 = vrot.lane.b32.xlu0 %v703, 111
    %v763 = vpop.permute.xlu0 %762
    %764 = vrot.lane.b32.xlu0 %v704, 111
    %v765 = vpop.permute.xlu0 %764
    %766 = vrot.lane.b32.xlu0 %v705, 111
    %v767 = vpop.permute.xlu0 %766
    %768 = vrot.lane.b32.xlu0 %v706, 111
    %v769 = vpop.permute.xlu0 %768
    %770 = vrot.lane.b32.xlu0 %v707, 111
    %v771 = vpop.permute.xlu0 %770
    %772 = vrot.lane.b32.xlu0 %v708, 111
    %v773 = vpop.permute.xlu0 %772
    %774 = vrot.lane.b32.xlu0 %v709, 111
    %v775 = vpop.permute.xlu0 %774
    %776 = vrot.lane.b32.xlu0 %v710, 111
    %v777 = vpop.permute.xlu0 %776
    %778 = vrot.lane.b32.xlu0 %v711, 111
    %v779 = vpop.permute.xlu0 %778
    %780 = vrot.lane.b32.xlu0 %v712, 111
    %v781 = vpop.permute.xlu0 %780
    %782 = vrot.lane.b32.xlu0 %v713, 111
    %v783 = vpop.permute.xlu0 %782
    %784 = vrot.lane.b32.xlu0 %v714, 111
    %v785 = vpop.permute.xlu0 %784
    %786 = vrot.lane.b32.xlu0 %v715, 111
    %v787 = vpop.permute.xlu0 %786
    %vm788 = vcmask 908288
    %v789 = vsel %vm788, %v741, %v743
    %v790 = vsel %vm788, %v743, %v745
    %v791 = vsel %vm788, %v747, %v749
    %v792 = vsel %vm788, %v749, %v751
    %v793 = vsel %vm788, %v753, %v755
    %v794 = vsel %vm788, %v755, %v757
    %v795 = vsel %vm788, %v759, %v761
    %v796 = vsel %vm788, %v761, %v763
    %v797 = vsel %vm788, %v765, %v767
    %v798 = vsel %vm788, %v767, %v769
    %v799 = vsel %vm788, %v771, %v773
    %v800 = vsel %vm788, %v773, %v775
    %v801 = vsel %vm788, %v777, %v779
    %v802 = vsel %vm788, %v779, %v781
    %v803 = vsel %vm788, %v783, %v785
    %v804 = vsel %vm788, %v785, %v787
    %v821 = vadd.f32 %v660, %v789
    %v822 = vadd.f32 %v661, %v790
    %v823 = vadd.f32 %v662, %v791
    %v824 = vadd.f32 %v663, %v792
    %v825 = vadd.f32 %v664, %v793
    %v826 = vadd.f32 %v665, %v794
    %v827 = vadd.f32 %v666, %v795
    %v828 = vadd.f32 %v667, %v796
    %v829 = vadd.f32 %v668, %v797
    %v830 = vadd.f32 %v669, %v798
    %v831 = vadd.f32 %v670, %v799
    %v832 = vadd.f32 %v671, %v800
    %v833 = vadd.f32 %v672, %v801
    %v834 = vadd.f32 %v673, %v802
    %v835 = vadd.f32 %v674, %v803
    %v836 = vadd.f32 %v675, %v804
    %837 = vrot.lane.b32.xlu0 %v173, 110
    %v838 = vpop.permute.xlu0 %837
    %839 = vrot.lane.b32.xlu0 %v174, 110
    %v840 = vpop.permute.xlu0 %839
    %841 = vrot.lane.b32.xlu0 %v175, 110
    %v842 = vpop.permute.xlu0 %841
    %843 = vrot.lane.b32.xlu0 %v176, 110
    %v844 = vpop.permute.xlu0 %843
    %845 = vrot.lane.b32.xlu0 %v177, 110
    %v846 = vpop.permute.xlu0 %845
    %847 = vrot.lane.b32.xlu0 %v178, 110
    %v848 = vpop.permute.xlu0 %847
    %849 = vrot.lane.b32.xlu0 %v179, 110
    %v850 = vpop.permute.xlu0 %849
    %851 = vrot.lane.b32.xlu0 %v180, 110
    %v852 = vpop.permute.xlu0 %851
    %853 = vrot.lane.b32.xlu0 %v181, 110
    %v854 = vpop.permute.xlu0 %853
    %855 = vrot.lane.b32.xlu0 %v182, 110
    %v856 = vpop.permute.xlu0 %855
    %857 = vrot.lane.b32.xlu0 %v183, 110
    %v858 = vpop.permute.xlu0 %857
    %859 = vrot.lane.b32.xlu0 %v184, 110
    %v860 = vpop.permute.xlu0 %859
    %861 = vrot.lane.b32.xlu0 %v185, 110
    %v862 = vpop.permute.xlu0 %861
    %863 = vrot.lane.b32.xlu0 %v186, 110
    %v864 = vpop.permute.xlu0 %863
    %865 = vrot.lane.b32.xlu0 %v187, 110
    %v866 = vpop.permute.xlu0 %865
    %867 = vrot.lane.b32.xlu0 %v188, 110
    %v868 = vpop.permute.xlu0 %867
    %869 = vrot.lane.b32.xlu0 %v189, 110
    %v870 = vpop.permute.xlu0 %869
    %871 = vrot.lane.b32.xlu0 %v190, 110
    %v872 = vpop.permute.xlu0 %871
    %873 = vrot.lane.b32.xlu0 %v191, 110
    %v874 = vpop.permute.xlu0 %873
    %875 = vrot.lane.b32.xlu0 %v192, 110
    %v876 = vpop.permute.xlu0 %875
    %877 = vrot.lane.b32.xlu0 %v193, 110
    %v878 = vpop.permute.xlu0 %877
    %879 = vrot.lane.b32.xlu0 %v194, 110
    %v880 = vpop.permute.xlu0 %879
    %881 = vrot.lane.b32.xlu0 %v195, 110
    %v882 = vpop.permute.xlu0 %881
    %883 = vrot.lane.b32.xlu0 %v196, 110
    %v884 = vpop.permute.xlu0 %883
    %vm885 = vcmask 900096
    %v886 = vsel %vm885, %v838, %v840
    %v887 = vsel %vm885, %v840, %v842
    %v888 = vsel %vm885, %v844, %v846
    %v889 = vsel %vm885, %v846, %v848
    %v890 = vsel %vm885, %v850, %v852
    %v891 = vsel %vm885, %v852, %v854
    %v892 = vsel %vm885, %v856, %v858
    %v893 = vsel %vm885, %v858, %v860
    %v894 = vsel %vm885, %v862, %v864
    %v895 = vsel %vm885, %v864, %v866
    %v896 = vsel %vm885, %v868, %v870
    %v897 = vsel %vm885, %v870, %v872
    %v898 = vsel %vm885, %v874, %v876
    %v899 = vsel %vm885, %v876, %v878
    %v900 = vsel %vm885, %v880, %v882
    %v901 = vsel %vm885, %v882, %v884
    %v918 = vsel %vm360, %v886, 0.0
    %v919 = vsel %vm361, %v887, 0.0
    %v920 = vsel %vm360, %v888, 0.0
    %v921 = vsel %vm361, %v889, 0.0
    %v922 = vsel %vm360, %v890, 0.0
    %v923 = vsel %vm361, %v891, 0.0
    %v924 = vsel %vm360, %v892, 0.0
    %v925 = vsel %vm361, %v893, 0.0
    %v926 = vsel %vm360, %v894, 0.0
    %v927 = vsel %vm361, %v895, 0.0
    %v928 = vsel %vm360, %v896, 0.0
    %v929 = vsel %vm361, %v897, 0.0
    %v930 = vsel %vm360, %v898, 0.0
    %v931 = vsel %vm361, %v899, 0.0
    %v932 = vsel %vm360, %v900, 0.0
    %v933 = vsel %vm361, %v901, 0.0
    %934 = vset.pattern.permute.xlu0 5
    %935 = vperm.xlu0 %934, %v81
    %v936 = vpop.permute.xlu0 %935
    %938 = vset.pattern.permute.xlu0 5
    %939 = vperm.xlu0 %938, %v82
    %v940 = vpop.permute.xlu0 %939
    %942 = vset.pattern.permute.xlu0 5
    %943 = vperm.xlu0 %942, %v83
    %v944 = vpop.permute.xlu0 %943
    %946 = vset.pattern.permute.xlu0 5
    %947 = vperm.xlu0 %946, %v84
    %v948 = vpop.permute.xlu0 %947
    %v950 = vmul.f32 %v918, %v936
    %v951 = vmul.f32 %v919, %v936
    %v952 = vmul.f32 %v920, %v940
    %v953 = vmul.f32 %v921, %v940
    %v954 = vmul.f32 %v922, %v944
    %v955 = vmul.f32 %v923, %v944
    %v956 = vmul.f32 %v924, %v948
    %v957 = vmul.f32 %v925, %v948
    %v958 = vmul.f32 %v926, %v936
    %v959 = vmul.f32 %v927, %v936
    %v960 = vmul.f32 %v928, %v940
    %v961 = vmul.f32 %v929, %v940
    %v962 = vmul.f32 %v930, %v944
    %v963 = vmul.f32 %v931, %v944
    %v964 = vmul.f32 %v932, %v948
    %v965 = vmul.f32 %v933, %v948
    %v966 = vadd.f32 %v821, %v950
    %v967 = vadd.f32 %v822, %v951
    %v968 = vadd.f32 %v823, %v952
    %v969 = vadd.f32 %v824, %v953
    %v970 = vadd.f32 %v825, %v954
    %v971 = vadd.f32 %v826, %v955
    %v972 = vadd.f32 %v827, %v956
    %v973 = vadd.f32 %v828, %v957
    %v974 = vadd.f32 %v829, %v958
    %v975 = vadd.f32 %v830, %v959
    %v976 = vadd.f32 %v831, %v960
    %v977 = vadd.f32 %v832, %v961
    %v978 = vadd.f32 %v833, %v962
    %v979 = vadd.f32 %v834, %v963
    %v980 = vadd.f32 %v835, %v964
    %v981 = vadd.f32 %v836, %v965
    %982 = vrot.lane.b32.xlu0 %v173, 96
    %v983 = vpop.permute.xlu0 %982
    %984 = vrot.lane.b32.xlu0 %v174, 96
    %v985 = vpop.permute.xlu0 %984
    %986 = vrot.lane.b32.xlu0 %v175, 96
    %v987 = vpop.permute.xlu0 %986
    %988 = vrot.lane.b32.xlu0 %v176, 96
    %v989 = vpop.permute.xlu0 %988
    %990 = vrot.lane.b32.xlu0 %v177, 96
    %v991 = vpop.permute.xlu0 %990
    %992 = vrot.lane.b32.xlu0 %v178, 96
    %v993 = vpop.permute.xlu0 %992
    %994 = vrot.lane.b32.xlu0 %v179, 96
    %v995 = vpop.permute.xlu0 %994
    %996 = vrot.lane.b32.xlu0 %v180, 96
    %v997 = vpop.permute.xlu0 %996
    %998 = vrot.lane.b32.xlu0 %v181, 96
    %v999 = vpop.permute.xlu0 %998
    %1000 = vrot.lane.b32.xlu0 %v182, 96
    %v1001 = vpop.permute.xlu0 %1000
    %1002 = vrot.lane.b32.xlu0 %v183, 96
    %v1003 = vpop.permute.xlu0 %1002
    %1004 = vrot.lane.b32.xlu0 %v184, 96
    %v1005 = vpop.permute.xlu0 %1004
    %1006 = vrot.lane.b32.xlu0 %v185, 96
    %v1007 = vpop.permute.xlu0 %1006
    %1008 = vrot.lane.b32.xlu0 %v186, 96
    %v1009 = vpop.permute.xlu0 %1008
    %1010 = vrot.lane.b32.xlu0 %v187, 96
    %v1011 = vpop.permute.xlu0 %1010
    %1012 = vrot.lane.b32.xlu0 %v188, 96
    %v1013 = vpop.permute.xlu0 %1012
    %1014 = vrot.lane.b32.xlu0 %v189, 96
    %v1015 = vpop.permute.xlu0 %1014
    %1016 = vrot.lane.b32.xlu0 %v190, 96
    %v1017 = vpop.permute.xlu0 %1016
    %1018 = vrot.lane.b32.xlu0 %v191, 96
    %v1019 = vpop.permute.xlu0 %1018
    %1020 = vrot.lane.b32.xlu0 %v192, 96
    %v1021 = vpop.permute.xlu0 %1020
    %1022 = vrot.lane.b32.xlu0 %v193, 96
    %v1023 = vpop.permute.xlu0 %1022
    %1024 = vrot.lane.b32.xlu0 %v194, 96
    %v1025 = vpop.permute.xlu0 %1024
    %1026 = vrot.lane.b32.xlu0 %v195, 96
    %v1027 = vpop.permute.xlu0 %1026
    %1028 = vrot.lane.b32.xlu0 %v196, 96
    %v1029 = vpop.permute.xlu0 %1028
    %vm1030 = vcmask 785408
    %v1031 = vsel %vm1030, %v983, %v985
    %v1032 = vsel %vm1030, %v985, %v987
    %v1033 = vsel %vm1030, %v989, %v991
    %v1034 = vsel %vm1030, %v991, %v993
    %v1035 = vsel %vm1030, %v995, %v997
    %v1036 = vsel %vm1030, %v997, %v999
    %v1037 = vsel %vm1030, %v1001, %v1003
    %v1038 = vsel %vm1030, %v1003, %v1005
    %v1039 = vsel %vm1030, %v1007, %v1009
    %v1040 = vsel %vm1030, %v1009, %v1011
    %v1041 = vsel %vm1030, %v1013, %v1015
    %v1042 = vsel %vm1030, %v1015, %v1017
    %v1043 = vsel %vm1030, %v1019, %v1021
    %v1044 = vsel %vm1030, %v1021, %v1023
    %v1045 = vsel %vm1030, %v1025, %v1027
    %v1046 = vsel %vm1030, %v1027, %v1029
    %v1063 = vsel %vm103, %v1031, 0.0
    %v1064 = vsel %vm104, %v1032, 0.0
    %v1065 = vsel %vm103, %v1033, 0.0
    %v1066 = vsel %vm104, %v1034, 0.0
    %v1067 = vsel %vm103, %v1035, 0.0
    %v1068 = vsel %vm104, %v1036, 0.0
    %v1069 = vsel %vm103, %v1037, 0.0
    %v1070 = vsel %vm104, %v1038, 0.0
    %v1071 = vsel %vm103, %v1039, 0.0
    %v1072 = vsel %vm104, %v1040, 0.0
    %v1073 = vsel %vm103, %v1041, 0.0
    %v1074 = vsel %vm104, %v1042, 0.0
    %v1075 = vsel %vm103, %v1043, 0.0
    %v1076 = vsel %vm104, %v1044, 0.0
    %v1077 = vsel %vm103, %v1045, 0.0
    %v1078 = vsel %vm104, %v1046, 0.0
    %1079 = vset.pattern.permute.xlu0 6
    %1080 = vperm.xlu0 %1079, %v81
    %v1081 = vpop.permute.xlu0 %1080
    %1083 = vset.pattern.permute.xlu0 6
    %1084 = vperm.xlu0 %1083, %v82
    %v1085 = vpop.permute.xlu0 %1084
    %1087 = vset.pattern.permute.xlu0 6
    %1088 = vperm.xlu0 %1087, %v83
    %v1089 = vpop.permute.xlu0 %1088
    %1091 = vset.pattern.permute.xlu0 6
    %1092 = vperm.xlu0 %1091, %v84
    %v1093 = vpop.permute.xlu0 %1092
    %v1095 = vmul.f32 %v1063, %v1081
    %v1096 = vmul.f32 %v1064, %v1081
    %v1097 = vmul.f32 %v1065, %v1085
    %v1098 = vmul.f32 %v1066, %v1085
    %v1099 = vmul.f32 %v1067, %v1089
    %v1100 = vmul.f32 %v1068, %v1089
    %v1101 = vmul.f32 %v1069, %v1093
    %v1102 = vmul.f32 %v1070, %v1093
    %v1103 = vmul.f32 %v1071, %v1081
    %v1104 = vmul.f32 %v1072, %v1081
    %v1105 = vmul.f32 %v1073, %v1085
    %v1106 = vmul.f32 %v1074, %v1085
    %v1107 = vmul.f32 %v1075, %v1089
    %v1108 = vmul.f32 %v1076, %v1089
    %v1109 = vmul.f32 %v1077, %v1093
    %v1110 = vmul.f32 %v1078, %v1093
    %v1111 = vadd.f32 %v966, %v1095
    %v1112 = vadd.f32 %v967, %v1096
    %v1113 = vadd.f32 %v968, %v1097
    %v1114 = vadd.f32 %v969, %v1098
    %v1115 = vadd.f32 %v970, %v1099
    %v1116 = vadd.f32 %v971, %v1100
    %v1117 = vadd.f32 %v972, %v1101
    %v1118 = vadd.f32 %v973, %v1102
    %v1119 = vadd.f32 %v974, %v1103
    %v1120 = vadd.f32 %v975, %v1104
    %v1121 = vadd.f32 %v976, %v1105
    %v1122 = vadd.f32 %v977, %v1106
    %v1123 = vadd.f32 %v978, %v1107
    %v1124 = vadd.f32 %v979, %v1108
    %v1125 = vadd.f32 %v980, %v1109
    %v1126 = vadd.f32 %v981, %v1110
    %1127 = vset.pattern.permute.xlu0 7
    %1128 = vperm.xlu0 %1127, %v81
    %v1129 = vpop.permute.xlu0 %1128
    %1131 = vset.pattern.permute.xlu0 7
    %1132 = vperm.xlu0 %1131, %v82
    %v1133 = vpop.permute.xlu0 %1132
    %1135 = vset.pattern.permute.xlu0 7
    %1136 = vperm.xlu0 %1135, %v83
    %v1137 = vpop.permute.xlu0 %1136
    %1139 = vset.pattern.permute.xlu0 7
    %1140 = vperm.xlu0 %1139, %v84
    %v1141 = vpop.permute.xlu0 %1140
    %v1143 = vmul.f32 %v173, %v1129
    %v1144 = vmul.f32 %v174, %v1129
    %v1145 = vmul.f32 %v175, %v1129
    %v1146 = vmul.f32 %v176, %v1133
    %v1147 = vmul.f32 %v177, %v1133
    %v1148 = vmul.f32 %v178, %v1133
    %v1149 = vmul.f32 %v179, %v1137
    %v1150 = vmul.f32 %v180, %v1137
    %v1151 = vmul.f32 %v181, %v1137
    %v1152 = vmul.f32 %v182, %v1141
    %v1153 = vmul.f32 %v183, %v1141
    %v1154 = vmul.f32 %v184, %v1141
    %v1155 = vmul.f32 %v185, %v1129
    %v1156 = vmul.f32 %v186, %v1129
    %v1157 = vmul.f32 %v187, %v1129
    %v1158 = vmul.f32 %v188, %v1133
    %v1159 = vmul.f32 %v189, %v1133
    %v1160 = vmul.f32 %v190, %v1133
    %v1161 = vmul.f32 %v191, %v1137
    %v1162 = vmul.f32 %v192, %v1137
    %v1163 = vmul.f32 %v193, %v1137
    %v1164 = vmul.f32 %v194, %v1141
    %v1165 = vmul.f32 %v195, %v1141
    %v1166 = vmul.f32 %v196, %v1141
    %1191 = vrot.lane.b32.xlu0 %v1143, 95
    %v1192 = vpop.permute.xlu0 %1191
    %1193 = vrot.lane.b32.xlu0 %v1144, 95
    %v1194 = vpop.permute.xlu0 %1193
    %1195 = vrot.lane.b32.xlu0 %v1145, 95
    %v1196 = vpop.permute.xlu0 %1195
    %1197 = vrot.lane.b32.xlu0 %v1146, 95
    %v1198 = vpop.permute.xlu0 %1197
    %1199 = vrot.lane.b32.xlu0 %v1147, 95
    %v1200 = vpop.permute.xlu0 %1199
    %1201 = vrot.lane.b32.xlu0 %v1148, 95
    %v1202 = vpop.permute.xlu0 %1201
    %1203 = vrot.lane.b32.xlu0 %v1149, 95
    %v1204 = vpop.permute.xlu0 %1203
    %1205 = vrot.lane.b32.xlu0 %v1150, 95
    %v1206 = vpop.permute.xlu0 %1205
    %1207 = vrot.lane.b32.xlu0 %v1151, 95
    %v1208 = vpop.permute.xlu0 %1207
    %1209 = vrot.lane.b32.xlu0 %v1152, 95
    %v1210 = vpop.permute.xlu0 %1209
    %1211 = vrot.lane.b32.xlu0 %v1153, 95
    %v1212 = vpop.permute.xlu0 %1211
    %1213 = vrot.lane.b32.xlu0 %v1154, 95
    %v1214 = vpop.permute.xlu0 %1213
    %1215 = vrot.lane.b32.xlu0 %v1155, 95
    %v1216 = vpop.permute.xlu0 %1215
    %1217 = vrot.lane.b32.xlu0 %v1156, 95
    %v1218 = vpop.permute.xlu0 %1217
    %1219 = vrot.lane.b32.xlu0 %v1157, 95
    %v1220 = vpop.permute.xlu0 %1219
    %1221 = vrot.lane.b32.xlu0 %v1158, 95
    %v1222 = vpop.permute.xlu0 %1221
    %1223 = vrot.lane.b32.xlu0 %v1159, 95
    %v1224 = vpop.permute.xlu0 %1223
    %1225 = vrot.lane.b32.xlu0 %v1160, 95
    %v1226 = vpop.permute.xlu0 %1225
    %1227 = vrot.lane.b32.xlu0 %v1161, 95
    %v1228 = vpop.permute.xlu0 %1227
    %1229 = vrot.lane.b32.xlu0 %v1162, 95
    %v1230 = vpop.permute.xlu0 %1229
    %1231 = vrot.lane.b32.xlu0 %v1163, 95
    %v1232 = vpop.permute.xlu0 %1231
    %1233 = vrot.lane.b32.xlu0 %v1164, 95
    %v1234 = vpop.permute.xlu0 %1233
    %1235 = vrot.lane.b32.xlu0 %v1165, 95
    %v1236 = vpop.permute.xlu0 %1235
    %1237 = vrot.lane.b32.xlu0 %v1166, 95
    %v1238 = vpop.permute.xlu0 %1237
    %vm1239 = vcmask 777216
    %v1240 = vsel %vm1239, %v1192, %v1194
    %v1241 = vsel %vm1239, %v1194, %v1196
    %v1242 = vsel %vm1239, %v1198, %v1200
    %v1243 = vsel %vm1239, %v1200, %v1202
    %v1244 = vsel %vm1239, %v1204, %v1206
    %v1245 = vsel %vm1239, %v1206, %v1208
    %v1246 = vsel %vm1239, %v1210, %v1212
    %v1247 = vsel %vm1239, %v1212, %v1214
    %v1248 = vsel %vm1239, %v1216, %v1218
    %v1249 = vsel %vm1239, %v1218, %v1220
    %v1250 = vsel %vm1239, %v1222, %v1224
    %v1251 = vsel %vm1239, %v1224, %v1226
    %v1252 = vsel %vm1239, %v1228, %v1230
    %v1253 = vsel %vm1239, %v1230, %v1232
    %v1254 = vsel %vm1239, %v1234, %v1236
    %v1255 = vsel %vm1239, %v1236, %v1238
    %v1272 = vadd.f32 %v1111, %v1240
    %v1273 = vadd.f32 %v1112, %v1241
    %v1274 = vadd.f32 %v1113, %v1242
    %v1275 = vadd.f32 %v1114, %v1243
    %v1276 = vadd.f32 %v1115, %v1244
    %v1277 = vadd.f32 %v1116, %v1245
    %v1278 = vadd.f32 %v1117, %v1246
    %v1279 = vadd.f32 %v1118, %v1247
    %v1280 = vadd.f32 %v1119, %v1248
    %v1281 = vadd.f32 %v1120, %v1249
    %v1282 = vadd.f32 %v1121, %v1250
    %v1283 = vadd.f32 %v1122, %v1251
    %v1284 = vadd.f32 %v1123, %v1252
    %v1285 = vadd.f32 %v1124, %v1253
    %v1286 = vadd.f32 %v1125, %v1254
    %v1287 = vadd.f32 %v1126, %v1255
    %1288 = vrot.lane.b32.xlu0 %v173, 94
    %v1289 = vpop.permute.xlu0 %1288
    %1290 = vrot.lane.b32.xlu0 %v174, 94
    %v1291 = vpop.permute.xlu0 %1290
    %1292 = vrot.lane.b32.xlu0 %v175, 94
    %v1293 = vpop.permute.xlu0 %1292
    %1294 = vrot.lane.b32.xlu0 %v176, 94
    %v1295 = vpop.permute.xlu0 %1294
    %1296 = vrot.lane.b32.xlu0 %v177, 94
    %v1297 = vpop.permute.xlu0 %1296
    %1298 = vrot.lane.b32.xlu0 %v178, 94
    %v1299 = vpop.permute.xlu0 %1298
    %1300 = vrot.lane.b32.xlu0 %v179, 94
    %v1301 = vpop.permute.xlu0 %1300
    %1302 = vrot.lane.b32.xlu0 %v180, 94
    %v1303 = vpop.permute.xlu0 %1302
    %1304 = vrot.lane.b32.xlu0 %v181, 94
    %v1305 = vpop.permute.xlu0 %1304
    %1306 = vrot.lane.b32.xlu0 %v182, 94
    %v1307 = vpop.permute.xlu0 %1306
    %1308 = vrot.lane.b32.xlu0 %v183, 94
    %v1309 = vpop.permute.xlu0 %1308
    %1310 = vrot.lane.b32.xlu0 %v184, 94
    %v1311 = vpop.permute.xlu0 %1310
    %1312 = vrot.lane.b32.xlu0 %v185, 94
    %v1313 = vpop.permute.xlu0 %1312
    %1314 = vrot.lane.b32.xlu0 %v186, 94
    %v1315 = vpop.permute.xlu0 %1314
    %1316 = vrot.lane.b32.xlu0 %v187, 94
    %v1317 = vpop.permute.xlu0 %1316
    %1318 = vrot.lane.b32.xlu0 %v188, 94
    %v1319 = vpop.permute.xlu0 %1318
    %1320 = vrot.lane.b32.xlu0 %v189, 94
    %v1321 = vpop.permute.xlu0 %1320
    %1322 = vrot.lane.b32.xlu0 %v190, 94
    %v1323 = vpop.permute.xlu0 %1322
    %1324 = vrot.lane.b32.xlu0 %v191, 94
    %v1325 = vpop.permute.xlu0 %1324
    %1326 = vrot.lane.b32.xlu0 %v192, 94
    %v1327 = vpop.permute.xlu0 %1326
    %1328 = vrot.lane.b32.xlu0 %v193, 94
    %v1329 = vpop.permute.xlu0 %1328
    %1330 = vrot.lane.b32.xlu0 %v194, 94
    %v1331 = vpop.permute.xlu0 %1330
    %1332 = vrot.lane.b32.xlu0 %v195, 94
    %v1333 = vpop.permute.xlu0 %1332
    %1334 = vrot.lane.b32.xlu0 %v196, 94
    %v1335 = vpop.permute.xlu0 %1334
    %vm1336 = vcmask 769024
    %v1337 = vsel %vm1336, %v1289, %v1291
    %v1338 = vsel %vm1336, %v1291, %v1293
    %v1339 = vsel %vm1336, %v1295, %v1297
    %v1340 = vsel %vm1336, %v1297, %v1299
    %v1341 = vsel %vm1336, %v1301, %v1303
    %v1342 = vsel %vm1336, %v1303, %v1305
    %v1343 = vsel %vm1336, %v1307, %v1309
    %v1344 = vsel %vm1336, %v1309, %v1311
    %v1345 = vsel %vm1336, %v1313, %v1315
    %v1346 = vsel %vm1336, %v1315, %v1317
    %v1347 = vsel %vm1336, %v1319, %v1321
    %v1348 = vsel %vm1336, %v1321, %v1323
    %v1349 = vsel %vm1336, %v1325, %v1327
    %v1350 = vsel %vm1336, %v1327, %v1329
    %v1351 = vsel %vm1336, %v1331, %v1333
    %v1352 = vsel %vm1336, %v1333, %v1335
    %v1369 = vsel %vm360, %v1337, 0.0
    %v1370 = vsel %vm361, %v1338, 0.0
    %v1371 = vsel %vm360, %v1339, 0.0
    %v1372 = vsel %vm361, %v1340, 0.0
    %v1373 = vsel %vm360, %v1341, 0.0
    %v1374 = vsel %vm361, %v1342, 0.0
    %v1375 = vsel %vm360, %v1343, 0.0
    %v1376 = vsel %vm361, %v1344, 0.0
    %v1377 = vsel %vm360, %v1345, 0.0
    %v1378 = vsel %vm361, %v1346, 0.0
    %v1379 = vsel %vm360, %v1347, 0.0
    %v1380 = vsel %vm361, %v1348, 0.0
    %v1381 = vsel %vm360, %v1349, 0.0
    %v1382 = vsel %vm361, %v1350, 0.0
    %v1383 = vsel %vm360, %v1351, 0.0
    %v1384 = vsel %vm361, %v1352, 0.0
    %1385 = vset.pattern.permute.xlu0 8
    %1386 = vperm.xlu0 %1385, %v81
    %v1387 = vpop.permute.xlu0 %1386
    %1389 = vset.pattern.permute.xlu0 8
    %1390 = vperm.xlu0 %1389, %v82
    %v1391 = vpop.permute.xlu0 %1390
    %1393 = vset.pattern.permute.xlu0 8
    %1394 = vperm.xlu0 %1393, %v83
    %v1395 = vpop.permute.xlu0 %1394
    %1397 = vset.pattern.permute.xlu0 8
    %1398 = vperm.xlu0 %1397, %v84
    %v1399 = vpop.permute.xlu0 %1398
    %v1401 = vmul.f32 %v1369, %v1387
    %v1402 = vmul.f32 %v1370, %v1387
    %v1403 = vmul.f32 %v1371, %v1391
    %v1404 = vmul.f32 %v1372, %v1391
    %v1405 = vmul.f32 %v1373, %v1395
    %v1406 = vmul.f32 %v1374, %v1395
    %v1407 = vmul.f32 %v1375, %v1399
    %v1408 = vmul.f32 %v1376, %v1399
    %v1409 = vmul.f32 %v1377, %v1387
    %v1410 = vmul.f32 %v1378, %v1387
    %v1411 = vmul.f32 %v1379, %v1391
    %v1412 = vmul.f32 %v1380, %v1391
    %v1413 = vmul.f32 %v1381, %v1395
    %v1414 = vmul.f32 %v1382, %v1395
    %v1415 = vmul.f32 %v1383, %v1399
    %v1416 = vmul.f32 %v1384, %v1399
    %v1417 = vadd.f32 %v1272, %v1401
    %v1418 = vadd.f32 %v1273, %v1402
    %v1419 = vadd.f32 %v1274, %v1403
    %v1420 = vadd.f32 %v1275, %v1404
    %v1421 = vadd.f32 %v1276, %v1405
    %v1422 = vadd.f32 %v1277, %v1406
    %v1423 = vadd.f32 %v1278, %v1407
    %v1424 = vadd.f32 %v1279, %v1408
    %v1425 = vadd.f32 %v1280, %v1409
    %v1426 = vadd.f32 %v1281, %v1410
    %v1427 = vadd.f32 %v1282, %v1411
    %v1428 = vadd.f32 %v1283, %v1412
    %v1429 = vadd.f32 %v1284, %v1413
    %v1430 = vadd.f32 %v1285, %v1414
    %v1431 = vadd.f32 %v1286, %v1415
    %v1432 = vadd.f32 %v1287, %v1416
    %v1433 = vadd.f32 %v1417, %v1418
    %1434 = vadd.xlane.f32.xlu0 %v1433
    %v1435 = vpop.xlane.xlu0 %1434
    %v1436 = vadd.f32 %v1419, %v1420
    %1437 = vadd.xlane.f32.xlu0 %v1436
    %v1438 = vpop.xlane.xlu0 %1437
    %v1439 = vadd.f32 %v1421, %v1422
    %1440 = vadd.xlane.f32.xlu0 %v1439
    %v1441 = vpop.xlane.xlu0 %1440
    %v1442 = vadd.f32 %v1423, %v1424
    %1443 = vadd.xlane.f32.xlu0 %v1442
    %v1444 = vpop.xlane.xlu0 %1443
    %v1445 = vadd.f32 %v1425, %v1426
    %1446 = vadd.xlane.f32.xlu0 %v1445
    %v1447 = vpop.xlane.xlu0 %1446
    %v1448 = vadd.f32 %v1427, %v1428
    %1449 = vadd.xlane.f32.xlu0 %v1448
    %v1450 = vpop.xlane.xlu0 %1449
    %v1451 = vadd.f32 %v1429, %v1430
    %1452 = vadd.xlane.f32.xlu0 %v1451
    %v1453 = vpop.xlane.xlu0 %1452
    %v1454 = vadd.f32 %v1431, %v1432
    %1455 = vadd.xlane.f32.xlu0 %v1454
    %v1456 = vpop.xlane.xlu0 %1455
    %v1457 = vmul.f32 %v1435, 0.00390625
    %v1458 = vmul.f32 %v1438, 0.00390625
    %v1459 = vmul.f32 %v1441, 0.00390625
    %v1460 = vmul.f32 %v1444, 0.00390625
    %v1461 = vmul.f32 %v1447, 0.00390625
    %v1462 = vmul.f32 %v1450, 0.00390625
    %v1463 = vmul.f32 %v1453, 0.00390625
    %v1464 = vmul.f32 %v1456, 0.00390625
    %v1465 = vsub.f32 %v1417, %v1457
    %v1466 = vsub.f32 %v1418, %v1457
    %v1467 = vsub.f32 %v1419, %v1458
    %v1468 = vsub.f32 %v1420, %v1458
    %v1469 = vsub.f32 %v1421, %v1459
    %v1470 = vsub.f32 %v1422, %v1459
    %v1471 = vsub.f32 %v1423, %v1460
    %v1472 = vsub.f32 %v1424, %v1460
    %v1473 = vsub.f32 %v1425, %v1461
    %v1474 = vsub.f32 %v1426, %v1461
    %v1475 = vsub.f32 %v1427, %v1462
    %v1476 = vsub.f32 %v1428, %v1462
    %v1477 = vsub.f32 %v1429, %v1463
    %v1478 = vsub.f32 %v1430, %v1463
    %v1479 = vsub.f32 %v1431, %v1464
    %v1480 = vsub.f32 %v1432, %v1464
    %v1481 = vmul.f32 %v1465, %v1465
    %v1482 = vmul.f32 %v1466, %v1466
    %v1483 = vmul.f32 %v1467, %v1467
    %v1484 = vmul.f32 %v1468, %v1468
    %v1485 = vmul.f32 %v1469, %v1469
    %v1486 = vmul.f32 %v1470, %v1470
    %v1487 = vmul.f32 %v1471, %v1471
    %v1488 = vmul.f32 %v1472, %v1472
    %v1489 = vmul.f32 %v1473, %v1473
    %v1490 = vmul.f32 %v1474, %v1474
    %v1491 = vmul.f32 %v1475, %v1475
    %v1492 = vmul.f32 %v1476, %v1476
    %v1493 = vmul.f32 %v1477, %v1477
    %v1494 = vmul.f32 %v1478, %v1478
    %v1495 = vmul.f32 %v1479, %v1479
    %v1496 = vmul.f32 %v1480, %v1480
    %v1497 = vadd.f32 %v1481, %v1482
    %1498 = vadd.xlane.f32.xlu0 %v1497
    %v1499 = vpop.xlane.xlu0 %1498
    %v1500 = vadd.f32 %v1483, %v1484
    %1501 = vadd.xlane.f32.xlu0 %v1500
    %v1502 = vpop.xlane.xlu0 %1501
    %v1503 = vadd.f32 %v1485, %v1486
    %1504 = vadd.xlane.f32.xlu0 %v1503
    %v1505 = vpop.xlane.xlu0 %1504
    %v1506 = vadd.f32 %v1487, %v1488
    %1507 = vadd.xlane.f32.xlu0 %v1506
    %v1508 = vpop.xlane.xlu0 %1507
    %v1509 = vadd.f32 %v1489, %v1490
    %1510 = vadd.xlane.f32.xlu0 %v1509
    %v1511 = vpop.xlane.xlu0 %1510
    %v1512 = vadd.f32 %v1491, %v1492
    %1513 = vadd.xlane.f32.xlu0 %v1512
    %v1514 = vpop.xlane.xlu0 %1513
    %v1515 = vadd.f32 %v1493, %v1494
    %1516 = vadd.xlane.f32.xlu0 %v1515
    %v1517 = vpop.xlane.xlu0 %1516
    %v1518 = vadd.f32 %v1495, %v1496
    %1519 = vadd.xlane.f32.xlu0 %v1518
    %v1520 = vpop.xlane.xlu0 %1519
    %v1521 = vmul.f32 %v1499, 0.00390625
    %v1522 = vmul.f32 %v1502, 0.00390625
    %v1523 = vmul.f32 %v1505, 0.00390625
    %v1524 = vmul.f32 %v1508, 0.00390625
    %v1525 = vmul.f32 %v1511, 0.00390625
    %v1526 = vmul.f32 %v1514, 0.00390625
    %v1527 = vmul.f32 %v1517, 0.00390625
    %v1528 = vmul.f32 %v1520, 0.00390625
    %v1529 = vadd.f32 %v1521, 1e-05
    %v1530 = vadd.f32 %v1522, 1e-05
    %v1531 = vadd.f32 %v1523, 1e-05
    %v1532 = vadd.f32 %v1524, 1e-05
    %v1533 = vadd.f32 %v1525, 1e-05
    %v1534 = vadd.f32 %v1526, 1e-05
    %v1535 = vadd.f32 %v1527, 1e-05
    %v1536 = vadd.f32 %v1528, 1e-05
    %v1537 = vrsqrt.pop %v1529
    %v1538 = vrsqrt.pop %v1530
    %v1539 = vrsqrt.pop %v1531
    %v1540 = vrsqrt.pop %v1532
    %v1541 = vrsqrt.pop %v1533
    %v1542 = vrsqrt.pop %v1534
    %v1543 = vrsqrt.pop %v1535
    %v1544 = vrsqrt.pop %v1536
    %v1545 = vld [vmem:[%s2] sm:$0xff]
    %v1546 = vld [vmem:[%s2 + $0x8] sm:$0xff]
    %v1547 = vld [vmem:[%s2 + $0x10] sm:$0xff]
    %v1548 = vld [vmem:[%s2 + $0x18] sm:$0xff]
    %v1549 = vld [vmem:[%s3] sm:$0xff]
    %v1550 = vld [vmem:[%s3 + $0x8] sm:$0xff]
    %v1551 = vld [vmem:[%s3 + $0x10] sm:$0xff]
    %v1552 = vld [vmem:[%s3 + $0x18] sm:$0xff]
    %v1553 = vmul.f32 %v1537, %v1545
    %v1554 = vmul.f32 %v1538, %v1546
    %v1555 = vmul.f32 %v1539, %v1547
    %v1556 = vmul.f32 %v1540, %v1548
    %v1557 = vmul.f32 %v1541, %v1545
    %v1558 = vmul.f32 %v1542, %v1546
    %v1559 = vmul.f32 %v1543, %v1547
    %v1560 = vmul.f32 %v1544, %v1548
    %1562 = vset.pattern.permute.xlu0 0
    %1563 = vperm.xlu0 %1562, %v1553
    %v1564 = vpop.permute.xlu0 %1563
    %1567 = vset.pattern.permute.xlu0 0
    %1568 = vperm.xlu0 %1567, %v1554
    %v1569 = vpop.permute.xlu0 %1568
    %1572 = vset.pattern.permute.xlu0 0
    %1573 = vperm.xlu0 %1572, %v1555
    %v1574 = vpop.permute.xlu0 %1573
    %1577 = vset.pattern.permute.xlu0 0
    %1578 = vperm.xlu0 %1577, %v1556
    %v1579 = vpop.permute.xlu0 %1578
    %1582 = vset.pattern.permute.xlu0 0
    %1583 = vperm.xlu0 %1582, %v1557
    %v1584 = vpop.permute.xlu0 %1583
    %1587 = vset.pattern.permute.xlu0 0
    %1588 = vperm.xlu0 %1587, %v1558
    %v1589 = vpop.permute.xlu0 %1588
    %1592 = vset.pattern.permute.xlu0 0
    %1593 = vperm.xlu0 %1592, %v1559
    %v1594 = vpop.permute.xlu0 %1593
    %1597 = vset.pattern.permute.xlu0 0
    %1598 = vperm.xlu0 %1597, %v1560
    %v1599 = vpop.permute.xlu0 %1598
    %v1601 = vmul.f32 %v1465, %v1564
    %v1602 = vmul.f32 %v1466, %v1564
    %v1603 = vmul.f32 %v1467, %v1569
    %v1604 = vmul.f32 %v1468, %v1569
    %v1605 = vmul.f32 %v1469, %v1574
    %v1606 = vmul.f32 %v1470, %v1574
    %v1607 = vmul.f32 %v1471, %v1579
    %v1608 = vmul.f32 %v1472, %v1579
    %v1609 = vmul.f32 %v1473, %v1584
    %v1610 = vmul.f32 %v1474, %v1584
    %v1611 = vmul.f32 %v1475, %v1589
    %v1612 = vmul.f32 %v1476, %v1589
    %v1613 = vmul.f32 %v1477, %v1594
    %v1614 = vmul.f32 %v1478, %v1594
    %v1615 = vmul.f32 %v1479, %v1599
    %v1616 = vmul.f32 %v1480, %v1599
    %1618 = vset.pattern.permute.xlu0 0
    %1619 = vperm.xlu0 %1618, %v1549
    %v1620 = vpop.permute.xlu0 %1619
    %1623 = vset.pattern.permute.xlu0 0
    %1624 = vperm.xlu0 %1623, %v1550
    %v1625 = vpop.permute.xlu0 %1624
    %1628 = vset.pattern.permute.xlu0 0
    %1629 = vperm.xlu0 %1628, %v1551
    %v1630 = vpop.permute.xlu0 %1629
    %1633 = vset.pattern.permute.xlu0 0
    %1634 = vperm.xlu0 %1633, %v1552
    %v1635 = vpop.permute.xlu0 %1634
    %v1637 = vadd.f32 %v1601, %v1620
    %v1638 = vadd.f32 %v1602, %v1620
    %v1639 = vadd.f32 %v1603, %v1625
    %v1640 = vadd.f32 %v1604, %v1625
    %v1641 = vadd.f32 %v1605, %v1630
    %v1642 = vadd.f32 %v1606, %v1630
    %v1643 = vadd.f32 %v1607, %v1635
    %v1644 = vadd.f32 %v1608, %v1635
    %v1645 = vadd.f32 %v1609, %v1620
    %v1646 = vadd.f32 %v1610, %v1620
    %v1647 = vadd.f32 %v1611, %v1625
    %v1648 = vadd.f32 %v1612, %v1625
    %v1649 = vadd.f32 %v1613, %v1630
    %v1650 = vadd.f32 %v1614, %v1630
    %v1651 = vadd.f32 %v1615, %v1635
    %v1652 = vadd.f32 %v1616, %v1635
    %v1653 = vld [vmem:[%s4] sm:$0xff]
    %v1654 = vld [vmem:[%s4 + $0x8] sm:$0xff]
    %v1655 = vld [vmem:[%s4 + $0x10] sm:$0xff]
    %v1656 = vld [vmem:[%s4 + $0x18] sm:$0xff]
    %v1657 = vld [vmem:[%s4 + $0x20] sm:$0xff]
    %v1658 = vld [vmem:[%s4 + $0x28] sm:$0xff]
    %v1659 = vld [vmem:[%s4 + $0x30] sm:$0xff]
    %v1660 = vld [vmem:[%s4 + $0x38] sm:$0xff]
    %vm1661 = vcmask 261120
    %v1663 = vsel %vm1661, %v1653, 0
    %v1666 = vsel %vm1661, %v1654, 0
    %v1669 = vsel %vm1661, %v1655, 0
    %v1672 = vsel %vm1661, %v1656, 0
    %v1675 = vsel %vm1661, %v1657, 0
    %v1678 = vsel %vm1661, %v1658, 0
    %v1681 = vsel %vm1661, %v1659, 0
    %v1684 = vsel %vm1661, %v1660, 0
    %1686 = vmatprep.subr.mxu0 0.0
    %1687 = vmatpush1.msra.mxu0 0.0
    %1688 = vmatprep.subr.mxu0 0.0
    %1689 = vmatpush1.msra.mxu0 0.0
    %1690 = vmatprep.subr.mxu0 0.0
    %1691 = vmatpush1.msra.mxu0 0.0
    %1692 = vmatprep.subr.mxu0 0.0
    %1693 = vmatpush1.msra.mxu0 0.0
    %1694 = vmatprep.subr.mxu0 0.0
    %1695 = vmatpush1.msra.mxu0 0.0
    %1696 = vmatprep.subr.mxu0 0.0
    %1697 = vmatpush1.msra.mxu0 0.0
    %1698 = vmatprep.subr.mxu0 0.0
    %1699 = vmatpush1.msra.mxu0 0.0
    %1700 = vmatprep.subr.mxu0 0.0
    %1701 = vmatpush1.msra.mxu0 0.0
    %1702 = vmatprep.subr.mxu0 0.0
    %1703 = vmatpush1.msra.mxu0 0.0
    %1704 = vmatprep.subr.mxu0 0.0
    %1705 = vmatpush1.msra.mxu0 0.0
    %1706 = vmatprep.subr.mxu0 0.0
    %1707 = vmatpush1.msra.mxu0 0.0
    %1708 = vmatprep.subr.mxu0 0.0
    %1709 = vmatpush1.msra.mxu0 0.0
    %1710 = vmatprep.subr.mxu0 %v1644
    %1711 = vmatpush1.msra.mxu0 %v1643
    %1712 = vmatprep.subr.mxu0 %v1642
    %1713 = vmatpush1.msra.mxu0 %v1641
    %1714 = vmatprep.subr.mxu0 %v1640
    %1715 = vmatpush1.msra.mxu0 %v1639
    %1716 = vmatprep.subr.mxu0 %v1638
    %1717 = vmatpush1.msra.mxu0 %v1637
    %1718 = vmatprep.subr.mxu0 0.0
    %1719 = vmatpush2.msra.mxu0 0.0
    %1720 = vmatprep.subr.mxu0 0.0
    %1721 = vmatpush2.msra.mxu0 0.0
    %1722 = vmatprep.subr.mxu0 0.0
    %1723 = vmatpush2.msra.mxu0 0.0
    %1724 = vmatprep.subr.mxu0 0.0
    %1725 = vmatpush2.msra.mxu0 0.0
    %1726 = vmatprep.subr.mxu0 0.0
    %1727 = vmatpush2.msra.mxu0 0.0
    %1728 = vmatprep.subr.mxu0 0.0
    %1729 = vmatpush2.msra.mxu0 0.0
    %1730 = vmatprep.subr.mxu0 0.0
    %1731 = vmatpush2.msra.mxu0 0.0
    %1732 = vmatprep.subr.mxu0 0.0
    %1733 = vmatpush2.msra.mxu0 0.0
    %1734 = vmatprep.subr.mxu0 0.0
    %1735 = vmatpush2.msra.mxu0 0.0
    %1736 = vmatprep.subr.mxu0 0.0
    %1737 = vmatpush2.msra.mxu0 0.0
    %1738 = vmatprep.subr.mxu0 0.0
    %1739 = vmatpush2.msra.mxu0 0.0
    %1740 = vmatprep.subr.mxu0 0.0
    %1741 = vmatpush2.msra.mxu0 0.0
    %1742 = vmatprep.subr.mxu0 0.0
    %1743 = vmatpush2.msra.mxu0 0.0
    %1744 = vmatprep.subr.mxu0 0.0
    %1745 = vmatpush2.msra.mxu0 0.0
    %1746 = vmatprep.subr.mxu0 0.0
    %1747 = vmatpush2.msra.mxu0 0.0
    %1748 = vmatprep.subr.mxu0 0.0
    %1749 = vmatpush2.msra.mxu0 0.0
    %1750 = vmatprep.mubr.f32.mxu0 0.0
    %1751 = vmatmul.mubr.f32.gmra.mxu0 %v1663
    %v1752 = vpop.f32.mrf.mxu0
    %v1753 = vadd.f32 0.0, %v1752
    %v1754 = vpop.f32.mrf.mxu0
    %v1755 = vadd.f32 0.0, %v1754
    %1756 = vmatprep.mubr.f32.mxu0 0.0
    %1757 = vmatmul.mubr.f32.gmra.mxu0 %v1666
    %v1758 = vpop.f32.mrf.mxu0
    %v1759 = vadd.f32 0.0, %v1758
    %v1760 = vpop.f32.mrf.mxu0
    %v1761 = vadd.f32 0.0, %v1760
    %1762 = vmatprep.mubr.f32.mxu0 0.0
    %1763 = vmatmul.mubr.f32.gmra.mxu0 %v1669
    %v1764 = vpop.f32.mrf.mxu0
    %v1765 = vadd.f32 0.0, %v1764
    %v1766 = vpop.f32.mrf.mxu0
    %v1767 = vadd.f32 0.0, %v1766
    %1768 = vmatprep.mubr.f32.mxu0 0.0
    %1769 = vmatmul.mubr.f32.gmra.mxu0 %v1672
    %v1770 = vpop.f32.mrf.mxu0
    %v1771 = vadd.f32 0.0, %v1770
    %v1772 = vpop.f32.mrf.mxu0
    %v1773 = vadd.f32 0.0, %v1772
    %1774 = vmatprep.mubr.f32.mxu0 0.0
    %1775 = vmatmul.mubr.f32.gmra.mxu0 %v1675
    %v1776 = vpop.f32.mrf.mxu0
    %v1777 = vadd.f32 0.0, %v1776
    %v1778 = vpop.f32.mrf.mxu0
    %v1779 = vadd.f32 0.0, %v1778
    %1780 = vmatprep.mubr.f32.mxu0 0.0
    %1781 = vmatmul.mubr.f32.gmra.mxu0 %v1678
    %v1782 = vpop.f32.mrf.mxu0
    %v1783 = vadd.f32 0.0, %v1782
    %v1784 = vpop.f32.mrf.mxu0
    %v1785 = vadd.f32 0.0, %v1784
    %1786 = vmatprep.mubr.f32.mxu0 0.0
    %1787 = vmatmul.mubr.f32.gmra.mxu0 %v1681
    %v1788 = vpop.f32.mrf.mxu0
    %v1789 = vadd.f32 0.0, %v1788
    %v1790 = vpop.f32.mrf.mxu0
    %v1791 = vadd.f32 0.0, %v1790
    %1792 = vmatprep.mubr.f32.mxu0 0.0
    %1793 = vmatmul.mubr.f32.gmra.mxu0 %v1684
    %v1794 = vpop.f32.mrf.mxu0
    %v1795 = vadd.f32 0.0, %v1794
    %v1796 = vpop.f32.mrf.mxu0
    %v1797 = vadd.f32 0.0, %v1796
    %1798 = vdwg.mxu0
    %1799 = vst [vmem:[#allocation5] sm:$0xff] %v1753
    %1800 = vst [vmem:[#allocation5 + $0x8] sm:$0xff] %v1755
    %1801 = vst [vmem:[#allocation5 + $0x10] sm:$0xff] %v1759
    %1802 = vst [vmem:[#allocation5 + $0x18] sm:$0xff] %v1761
    %1803 = vst [vmem:[#allocation5 + $0x20] sm:$0xff] %v1765
    %1804 = vst [vmem:[#allocation5 + $0x28] sm:$0xff] %v1767
    %1805 = vst [vmem:[#allocation5 + $0x30] sm:$0xff] %v1771
    %1806 = vst [vmem:[#allocation5 + $0x38] sm:$0xff] %v1773
    %1807 = vst [vmem:[#allocation5 + $0x40] sm:$0xff] %v1777
    %1808 = vst [vmem:[#allocation5 + $0x48] sm:$0xff] %v1779
    %1809 = vst [vmem:[#allocation5 + $0x50] sm:$0xff] %v1783
    %1810 = vst [vmem:[#allocation5 + $0x58] sm:$0xff] %v1785
    %1811 = vst [vmem:[#allocation5 + $0x60] sm:$0xff] %v1789
    %1812 = vst [vmem:[#allocation5 + $0x68] sm:$0xff] %v1791
    %1813 = vst [vmem:[#allocation5 + $0x70] sm:$0xff] %v1795
    %1814 = vst [vmem:[#allocation5 + $0x78] sm:$0xff] %v1797
    %1815 = vmatprep.subr.mxu0 0.0
    %1816 = vmatpush1.msra.mxu0 0.0
    %1817 = vmatprep.subr.mxu0 0.0
    %1818 = vmatpush1.msra.mxu0 0.0
    %1819 = vmatprep.subr.mxu0 0.0
    %1820 = vmatpush1.msra.mxu0 0.0
    %1821 = vmatprep.subr.mxu0 0.0
    %1822 = vmatpush1.msra.mxu0 0.0
    %1823 = vmatprep.subr.mxu0 0.0
    %1824 = vmatpush1.msra.mxu0 0.0
    %1825 = vmatprep.subr.mxu0 0.0
    %1826 = vmatpush1.msra.mxu0 0.0
    %1827 = vmatprep.subr.mxu0 0.0
    %1828 = vmatpush1.msra.mxu0 0.0
    %1829 = vmatprep.subr.mxu0 0.0
    %1830 = vmatpush1.msra.mxu0 0.0
    %1831 = vmatprep.subr.mxu0 0.0
    %1832 = vmatpush1.msra.mxu0 0.0
    %1833 = vmatprep.subr.mxu0 0.0
    %1834 = vmatpush1.msra.mxu0 0.0
    %1835 = vmatprep.subr.mxu0 0.0
    %1836 = vmatpush1.msra.mxu0 0.0
    %1837 = vmatprep.subr.mxu0 0.0
    %1838 = vmatpush1.msra.mxu0 0.0
    %1839 = vmatprep.subr.mxu0 %v1652
    %1840 = vmatpush1.msra.mxu0 %v1651
    %1841 = vmatprep.subr.mxu0 %v1650
    %1842 = vmatpush1.msra.mxu0 %v1649
    %1843 = vmatprep.subr.mxu0 %v1648
    %1844 = vmatpush1.msra.mxu0 %v1647
    %1845 = vmatprep.subr.mxu0 %v1646
    %1846 = vmatpush1.msra.mxu0 %v1645
    %1847 = vmatprep.subr.mxu0 0.0
    %1848 = vmatpush2.msra.mxu0 0.0
    %1849 = vmatprep.subr.mxu0 0.0
    %1850 = vmatpush2.msra.mxu0 0.0
    %1851 = vmatprep.subr.mxu0 0.0
    %1852 = vmatpush2.msra.mxu0 0.0
    %1853 = vmatprep.subr.mxu0 0.0
    %1854 = vmatpush2.msra.mxu0 0.0
    %1855 = vmatprep.subr.mxu0 0.0
    %1856 = vmatpush2.msra.mxu0 0.0
    %1857 = vmatprep.subr.mxu0 0.0
    %1858 = vmatpush2.msra.mxu0 0.0
    %1859 = vmatprep.subr.mxu0 0.0
    %1860 = vmatpush2.msra.mxu0 0.0
    %1861 = vmatprep.subr.mxu0 0.0
    %1862 = vmatpush2.msra.mxu0 0.0
    %1863 = vmatprep.subr.mxu0 0.0
    %1864 = vmatpush2.msra.mxu0 0.0
    %1865 = vmatprep.subr.mxu0 0.0
    %1866 = vmatpush2.msra.mxu0 0.0
    %1867 = vmatprep.subr.mxu0 0.0
    %1868 = vmatpush2.msra.mxu0 0.0
    %1869 = vmatprep.subr.mxu0 0.0
    %1870 = vmatpush2.msra.mxu0 0.0
    %1871 = vmatprep.subr.mxu0 0.0
    %1872 = vmatpush2.msra.mxu0 0.0
    %1873 = vmatprep.subr.mxu0 0.0
    %1874 = vmatpush2.msra.mxu0 0.0
    %1875 = vmatprep.subr.mxu0 0.0
    %1876 = vmatpush2.msra.mxu0 0.0
    %1877 = vmatprep.subr.mxu0 0.0
    %1878 = vmatpush2.msra.mxu0 0.0
    %1879 = vmatprep.mubr.f32.mxu0 0.0
    %1880 = vmatmul.mubr.f32.gmra.mxu0 %v1663
    %v1881 = vpop.f32.mrf.mxu0
    %v1882 = vadd.f32 0.0, %v1881
    %v1883 = vpop.f32.mrf.mxu0
    %v1884 = vadd.f32 0.0, %v1883
    %1885 = vmatprep.mubr.f32.mxu0 0.0
    %1886 = vmatmul.mubr.f32.gmra.mxu0 %v1666
    %v1887 = vpop.f32.mrf.mxu0
    %v1888 = vadd.f32 0.0, %v1887
    %v1889 = vpop.f32.mrf.mxu0
    %v1890 = vadd.f32 0.0, %v1889
    %1891 = vmatprep.mubr.f32.mxu0 0.0
    %1892 = vmatmul.mubr.f32.gmra.mxu0 %v1669
    %v1893 = vpop.f32.mrf.mxu0
    %v1894 = vadd.f32 0.0, %v1893
    %v1895 = vpop.f32.mrf.mxu0
    %v1896 = vadd.f32 0.0, %v1895
    %1897 = vmatprep.mubr.f32.mxu0 0.0
    %1898 = vmatmul.mubr.f32.gmra.mxu0 %v1672
    %v1899 = vpop.f32.mrf.mxu0
    %v1900 = vadd.f32 0.0, %v1899
    %v1901 = vpop.f32.mrf.mxu0
    %v1902 = vadd.f32 0.0, %v1901
    %1903 = vmatprep.mubr.f32.mxu0 0.0
    %1904 = vmatmul.mubr.f32.gmra.mxu0 %v1675
    %v1905 = vpop.f32.mrf.mxu0
    %v1906 = vadd.f32 0.0, %v1905
    %v1907 = vpop.f32.mrf.mxu0
    %v1908 = vadd.f32 0.0, %v1907
    %1909 = vmatprep.mubr.f32.mxu0 0.0
    %1910 = vmatmul.mubr.f32.gmra.mxu0 %v1678
    %v1911 = vpop.f32.mrf.mxu0
    %v1912 = vadd.f32 0.0, %v1911
    %v1913 = vpop.f32.mrf.mxu0
    %v1914 = vadd.f32 0.0, %v1913
    %1915 = vmatprep.mubr.f32.mxu0 0.0
    %1916 = vmatmul.mubr.f32.gmra.mxu0 %v1681
    %v1917 = vpop.f32.mrf.mxu0
    %v1918 = vadd.f32 0.0, %v1917
    %v1919 = vpop.f32.mrf.mxu0
    %v1920 = vadd.f32 0.0, %v1919
    %1921 = vmatprep.mubr.f32.mxu0 0.0
    %1922 = vmatmul.mubr.f32.gmra.mxu0 %v1684
    %v1923 = vpop.f32.mrf.mxu0
    %v1924 = vadd.f32 0.0, %v1923
    %v1925 = vpop.f32.mrf.mxu0
    %v1926 = vadd.f32 0.0, %v1925
    %1927 = vdwg.mxu0
    %s1928 = scalar_lea.vmem [#allocation5], 128
    %1929 = vst [vmem:[%s1928] sm:$0xff] %v1882
    %1930 = vst [vmem:[%s1928 + $0x8] sm:$0xff] %v1884
    %1931 = vst [vmem:[%s1928 + $0x10] sm:$0xff] %v1888
    %1932 = vst [vmem:[%s1928 + $0x18] sm:$0xff] %v1890
    %1933 = vst [vmem:[%s1928 + $0x20] sm:$0xff] %v1894
    %1934 = vst [vmem:[%s1928 + $0x28] sm:$0xff] %v1896
    %1935 = vst [vmem:[%s1928 + $0x30] sm:$0xff] %v1900
    %1936 = vst [vmem:[%s1928 + $0x38] sm:$0xff] %v1902
    %1937 = vst [vmem:[%s1928 + $0x40] sm:$0xff] %v1906
    %1938 = vst [vmem:[%s1928 + $0x48] sm:$0xff] %v1908
    %1939 = vst [vmem:[%s1928 + $0x50] sm:$0xff] %v1912
    %1940 = vst [vmem:[%s1928 + $0x58] sm:$0xff] %v1914
    %1941 = vst [vmem:[%s1928 + $0x60] sm:$0xff] %v1918
    %1942 = vst [vmem:[%s1928 + $0x68] sm:$0xff] %v1920
    %1943 = vst [vmem:[%s1928 + $0x70] sm:$0xff] %v1924
    %1944 = vst [vmem:[%s1928 + $0x78] sm:$0xff] %v1926
    // Predicated region
    $region30: #{tpu_custom_call.1} parent=1 // pred_check
      _
    $region31: #{tpu_custom_call.1} parent=1 // pred_check_branch
      %1946 = sbr.rel (0) target = $region33
    $region32: #{tpu_custom_call.1} parent=1 // pred_region
      %s1948 = ssub.s32 4096, 4096
      %1949 = vsyncadd [#allocation4], %s1948
      %s1950 = sshll.u32 [#allocation5], 4
      %s1951 = int_to_ptr.vmem [resolvable:$true] %s1950
      %1956 = dma.vmem_to_hbm [thread:$0]  %s1951, 4096, %s6, [#allocation4], 256, 256, 16
    $region33: #{tpu_custom_call.1} parent=1 // pred_fallthru
      _
    // Predicated region
    $region34: #{tpu_custom_call.1} parent=1 // pred_check
      _
    $region35: #{tpu_custom_call.1} parent=1 // pred_check_branch
      %1958 = sbr.rel (0) target = $region37
    $region36: #{tpu_custom_call.1} parent=1 // pred_region
      %1959 = dma.done [#allocation4], 4096
    $region37: #{tpu_custom_call.1} parent=1 // pred_fallthru
      _
    %1960 = vsyncpa [#allocation3], 1
    %1961 = vsyncpa [#allocation4], 1

</llo_original>
